<compile_context>
chip_gen: v6e
topology: v6e:2x2x1
jax: 0.10.0
libtpu: 0.0.40
codegen_flags: <defaults>
</compile_context>

<pallas_src>
import jax
import jax.numpy as jnp
from jax.experimental import pallas as pl
from jax.experimental.pallas import tpu as pltpu


def mlp_kernel(x_ref, w1_ref, b1_ref, w2_ref, b2_ref, o_ref, acc_ref):
    p = pl.program_id(0)           # parallel slab of the hidden dim (megacore)
    k = pl.program_id(1)           # pipelined hidden tile within the slab
    nk = pl.num_programs(1)

    @pl.when(k == 0)
    def _init():
        # Only the p==0 slab carries the fc2 bias so the cross-slab sum adds it once.
        bias_once = b2_ref[...] * (p == 0).astype(jnp.float32)   # (1, Opad)
        acc_ref[...] = jnp.zeros_like(acc_ref) + bias_once       # -> (Bp, Opad)

    # fc1 partial for this hidden tile: (Bp, D)bf16 @ (D, TH)bf16 -> (Bp, TH)f32
    h = jnp.dot(x_ref[...], w1_ref[...], preferred_element_type=jnp.float32)
    h = jnp.maximum(h + b1_ref[...], 0.0)                        # bias + ReLU

    # fc2 partial accumulate: (Bp, TH)bf16 @ (TH, Opad)bf16 -> (Bp, Opad)f32
    acc_ref[...] += jnp.dot(h.astype(jnp.bfloat16), w2_ref[...],
                            preferred_element_type=jnp.float32)

    @pl.when(k == nk - 1)
    def _finalize():
        o_ref[...] = acc_ref[...].astype(o_ref.dtype)


def mlp_forward(x, w1, b1, w2, b2):
    """x: (B, C, H, W) or (B, D). Returns (B, out_size) in float32."""
    B = x.shape[0]
    x2d = x.reshape(B, -1)                    # x.view(x.size(0), -1)
    D = x2d.shape[1]
    H = w1.shape[1]
    O = w2.shape[1]

    # bf16 streaming for MXU operands; biases stay f32 (tiny, added to f32 acc).
    xb = x2d.astype(jnp.bfloat16)
    w1b = w1.astype(jnp.bfloat16)
    w2b = w2.astype(jnp.bfloat16)
    b1f = b1.astype(jnp.float32)
    b2f = b2.astype(jnp.float32)

    # Pad batch rows to a sublane multiple (8) and fc2 width to a lane multiple (128).
    Bp = max(8, ((B + 7) // 8) * 8)
    Opad = ((O + 127) // 128) * 128
    if Bp != B:
        xb = jnp.pad(xb, ((0, Bp - B), (0, 0)))
    if Opad != O:
        w2b = jnp.pad(w2b, ((0, 0), (0, Opad - O)))
        b2f = jnp.pad(b2f, ((0, 0), (0, Opad - O)))

    # Hidden-dim split: NP parallel slabs (2 TCs on v7x) x NK pipelined tiles each.
    NP = 2
    assert H % NP == 0, "hidden size must be even for the 2-way parallel split"
    half = H // NP
    TH = 256 if half % 256 == 0 else half
    NK = half // TH

    partials = pl.pallas_call(
        mlp_kernel,
        out_shape=jax.ShapeDtypeStruct((NP, Bp, Opad), jnp.float32),
        grid_spec=pltpu.PrefetchScalarGridSpec(
            num_scalar_prefetch=0,
            grid=(NP, NK),
            in_specs=[
                pl.BlockSpec((Bp, D), lambda p, k: (0, 0)),              # x (resident)
                pl.BlockSpec((D, TH), lambda p, k: (0, p * NK + k)),     # w1 tile
                pl.BlockSpec((1, TH), lambda p, k: (0, p * NK + k)),     # b1 tile
                pl.BlockSpec((TH, Opad), lambda p, k: (p * NK + k, 0)),  # w2 tile
                pl.BlockSpec((1, Opad), lambda p, k: (0, 0)),            # b2 (resident)
            ],
            out_specs=pl.BlockSpec((None, Bp, Opad), lambda p, k: (p, 0, 0)),
            scratch_shapes=[pltpu.VMEM((Bp, Opad), jnp.float32)],
        ),
        compiler_params=pltpu.CompilerParams(
            dimension_semantics=("parallel", "arbitrary"),
            vmem_limit_bytes=32 << 20,
        ),
    )(xb, w1b, b1f, w2b, b2f)

    # Sum the two partial fc2 slabs (each covered half of the hidden reduction),
    # then drop the row/column padding.
    y = partials.sum(axis=0)
    return y[:B, :O]


def init_params(key, input_size=2048, hidden=1024, out_size=200, dtype=jnp.float32):
    """Deterministic PyTorch-style (kaiming-uniform-ish) init; synthetic weights."""
    k1, k2, k3, k4 = jax.random.split(key, 4)
    bound1 = 1.0 / (input_size ** 0.5)
    bound2 = 1.0 / (hidden ** 0.5)
    # Stored as (in, out) so the kernel computes x @ W + b.
    w1 = jax.random.uniform(k1, (input_size, hidden), dtype, -bound1, bound1)
    b1 = jax.random.uniform(k2, (1, hidden), dtype, -bound1, bound1)
    w2 = jax.random.uniform(k3, (hidden, out_size), dtype, -bound2, bound2)
    b2 = jax.random.uniform(k4, (1, out_size), dtype, -bound2, bound2)
    return w1, b1, w2, b2


if __name__ == "__main__":
    key = jax.random.PRNGKey(0)
    kx, kp = jax.random.split(key)

    # Small input whose flattened size matches input_size=2048: (2, 4, 16, 32).
    B, C, Himg, Wimg = 2, 4, 16, 32
    input_size = C * Himg * Wimg             # 2048
    out_size = 200

    x = jax.random.normal(kx, (B, C, Himg, Wimg), dtype=jnp.float32)
    w1, b1, w2, b2 = init_params(kp, input_size=input_size, out_size=out_size)

    y = mlp_forward(x, w1, b1, w2, b2)
    y = jax.block_until_ready(y)

    # Sanity check against a pure-JAX f32 reference of the same forward pass.
    # Tolerance loosened because the kernel streams weights/activations in bf16.
    x2d = x.reshape(B, -1)
    ref = jnp.maximum(x2d @ w1 + b1, 0.0) @ w2 + b2
    assert y.shape == (B, out_size)
    assert jnp.allclose(y, ref, atol=5e-2, rtol=5e-2)

    print("KERNEL_OK")
</pallas_src>

<mosaic_0001>
module attributes {stable_mosaic.version = 11 : i64} {
  func.func @mlp_kernel(%arg0: i32, %arg1: i32, %arg2: memref<8x2048xbf16, #tpu.memory_space<vmem>>, %arg3: memref<2048x256xbf16, #tpu.memory_space<vmem>>, %arg4: memref<1x256xf32, #tpu.memory_space<vmem>>, %arg5: memref<256x256xbf16, #tpu.memory_space<vmem>>, %arg6: memref<1x256xf32, #tpu.memory_space<vmem>>, %arg7: memref<1x8x256xf32, #tpu.memory_space<vmem>>, %arg8: memref<8x256xf32, #tpu.memory_space<vmem>>) attributes {dimension_semantics = [#tpu.dimension_semantics<parallel>, #tpu.dimension_semantics<arbitrary>], iteration_bounds = array<i64: 2, 2>, scalar_prefetch = 0 : i64, scratch_operands = 1 : i64, tpu.core_type = #tpu.core_type<tc>, window_params = [{pipeline_mode = #tpu.pipeline_mode<synchronous>, transform_indices = @transform_0, window_bounds = array<i64: 8, 2048>}, {transform_indices = @transform_1, window_bounds = array<i64: 2048, 256>}, {transform_indices = @transform_2, window_bounds = array<i64: 1, 256>}, {transform_indices = @transform_3, window_bounds = array<i64: 256, 256>}, {pipeline_mode = #tpu.pipeline_mode<synchronous>, transform_indices = @transform_4, window_bounds = array<i64: 1, 256>}, {transform_indices = @transform_5, window_bounds = array<i64: 1, 8, 256>}]} {
    %c0_i32 = arith.constant 0 : i32
    %0 = arith.cmpi eq, %arg1, %c0_i32 : i32
    %1 = arith.extui %0 : i1 to i32
    %c0_i32_0 = arith.constant 0 : i32
    %2 = arith.cmpi ne, %1, %c0_i32_0 : i32
    scf.if %2 {
      %c0_15 = arith.constant 0 : index
      %c0_16 = arith.constant 0 : index
      %20 = vector.load %arg6[%c0_15, %c0_16] : memref<1x256xf32, #tpu.memory_space<vmem>>, vector<1x256xf32>
      %c0_i32_17 = arith.constant 0 : i32
      %21 = arith.cmpi eq, %arg0, %c0_i32_17 : i32
      %22 = arith.extui %21 : i1 to i32
      %23 = arith.sitofp %22 : i32 to f32
      %24 = vector.broadcast %23 : f32 to vector<1x256xf32>
      %25 = arith.mulf %20, %24 : vector<1x256xf32>
      %cst_18 = arith.constant 0.000000e+00 : f32
      %26 = vector.broadcast %cst_18 : f32 to vector<8x256xf32>
      %27 = vector.broadcast %25 : vector<1x256xf32> to vector<8x256xf32>
      %28 = arith.addf %26, %27 : vector<8x256xf32>
      %c0_19 = arith.constant 0 : index
      %c0_20 = arith.constant 0 : index
      %29 = vector.load %arg8[%c0_19, %c0_20] : memref<8x256xf32, #tpu.memory_space<vmem>>, vector<8x256xf32>
      tpu.vector_store %arg8[%c0_19, %c0_20], %28 {strides = array<i32>} : memref<8x256xf32, #tpu.memory_space<vmem>>, vector<8x256xf32>,
    } else {
    }
    %c0 = arith.constant 0 : index
    %c0_1 = arith.constant 0 : index
    %3 = vector.load %arg2[%c0, %c0_1] : memref<8x2048xbf16, #tpu.memory_space<vmem>>, vector<8x2048xbf16>
    %c0_2 = arith.constant 0 : index
    %c0_3 = arith.constant 0 : index
    %4 = vector.load %arg3[%c0_2, %c0_3] : memref<2048x256xbf16, #tpu.memory_space<vmem>>, vector<2048x256xbf16>
    %cst = arith.constant dense<0.000000e+00> : vector<8x256xf32>
    %5 = tpu.matmul %3, %4, %cst {dimension_numbers = #tpu.dot_dimension_numbers<[1], [0], [0], [1], [0, 0, 1, 1], [], []>} : vector<8x2048xbf16>, vector<2048x256xbf16>, vector<8x256xf32> -> vector<8x256xf32>
    %c0_4 = arith.constant 0 : index
    %c0_5 = arith.constant 0 : index
    %6 = vector.load %arg4[%c0_4, %c0_5] : memref<1x256xf32, #tpu.memory_space<vmem>>, vector<1x256xf32>
    %7 = vector.broadcast %6 : vector<1x256xf32> to vector<8x256xf32>
    %8 = arith.addf %5, %7 : vector<8x256xf32>
    %cst_6 = arith.constant 0.000000e+00 : f32
    %9 = vector.broadcast %cst_6 : f32 to vector<8x256xf32>
    %10 = arith.maximumf %8, %9 : vector<8x256xf32>
    %c0_7 = arith.constant 0 : index
    %c0_8 = arith.constant 0 : index
    %11 = vector.load %arg8[%c0_7, %c0_8] : memref<8x256xf32, #tpu.memory_space<vmem>>, vector<8x256xf32>
    %12 = arith.truncf %10 : vector<8x256xf32> to vector<8x256xbf16>
    %c0_9 = arith.constant 0 : index
    %c0_10 = arith.constant 0 : index
    %13 = vector.load %arg5[%c0_9, %c0_10] : memref<256x256xbf16, #tpu.memory_space<vmem>>, vector<256x256xbf16>
    %cst_11 = arith.constant dense<0.000000e+00> : vector<8x256xf32>
    %14 = tpu.matmul %12, %13, %cst_11 {dimension_numbers = #tpu.dot_dimension_numbers<[1], [0], [0], [1], [0, 0, 1, 1], [], []>} : vector<8x256xbf16>, vector<256x256xbf16>, vector<8x256xf32> -> vector<8x256xf32>
    %15 = arith.addf %11, %14 : vector<8x256xf32>
    %c0_12 = arith.constant 0 : index
    %c0_13 = arith.constant 0 : index
    %16 = vector.load %arg8[%c0_12, %c0_13] : memref<8x256xf32, #tpu.memory_space<vmem>>, vector<8x256xf32>
    tpu.vector_store %arg8[%c0_12, %c0_13], %15 {strides = array<i32>} : memref<8x256xf32, #tpu.memory_space<vmem>>, vector<8x256xf32>,
    %c1_i32 = arith.constant 1 : i32
    %17 = arith.cmpi eq, %arg1, %c1_i32 : i32
    %18 = arith.extui %17 : i1 to i32
    %c0_i32_14 = arith.constant 0 : i32
    %19 = arith.cmpi ne, %18, %c0_i32_14 : i32
    scf.if %19 {
      %c0_15 = arith.constant 0 : index
      %c0_16 = arith.constant 0 : index
      %20 = vector.load %arg8[%c0_15, %c0_16] : memref<8x256xf32, #tpu.memory_space<vmem>>, vector<8x256xf32>
      %c0_17 = arith.constant 0 : index
      %c0_18 = arith.constant 0 : index
      %c0_19 = arith.constant 0 : index
      %21 = vector.load %arg7[%c0_17, %c0_18, %c0_19] : memref<1x8x256xf32, #tpu.memory_space<vmem>>, vector<1x8x256xf32>
      %22 = vector.shape_cast %21 : vector<1x8x256xf32> to vector<8x256xf32>
      %23 = vector.shape_cast %20 : vector<8x256xf32> to vector<1x8x256xf32>
      tpu.vector_store %arg7[%c0_17, %c0_18, %c0_19], %23 {strides = array<i32>} : memref<1x8x256xf32, #tpu.memory_space<vmem>>, vector<1x8x256xf32>,
    } else {
    }
    return
  }
  func.func @transform_0(%arg0: i32, %arg1: i32) -> (i32, i32) {
    %c0_i32 = arith.constant 0 : i32
    %c0_i32_0 = arith.constant 0 : i32
    %c0_i32_1 = arith.constant 0 : i32
    return %c0_i32, %c0_i32_0 : i32, i32
  }
  func.func @transform_1(%arg0: i32, %arg1: i32) -> (i32, i32) {
    %c2_i32 = arith.constant 2 : i32
    %0 = arith.muli %arg0, %c2_i32 : i32
    %1 = arith.addi %0, %arg1 : i32
    %c0_i32 = arith.constant 0 : i32
    %c0_i32_0 = arith.constant 0 : i32
    return %c0_i32, %1 : i32, i32
  }
  func.func @transform_2(%arg0: i32, %arg1: i32) -> (i32, i32) {
    %c2_i32 = arith.constant 2 : i32
    %0 = arith.muli %arg0, %c2_i32 : i32
    %1 = arith.addi %0, %arg1 : i32
    %c0_i32 = arith.constant 0 : i32
    %c0_i32_0 = arith.constant 0 : i32
    return %c0_i32, %1 : i32, i32
  }
  func.func @transform_3(%arg0: i32, %arg1: i32) -> (i32, i32) {
    %c2_i32 = arith.constant 2 : i32
    %0 = arith.muli %arg0, %c2_i32 : i32
    %1 = arith.addi %0, %arg1 : i32
    %c0_i32 = arith.constant 0 : i32
    %c0_i32_0 = arith.constant 0 : i32
    return %1, %c0_i32 : i32, i32
  }
  func.func @transform_4(%arg0: i32, %arg1: i32) -> (i32, i32) {
    %c0_i32 = arith.constant 0 : i32
    %c0_i32_0 = arith.constant 0 : i32
    %c0_i32_1 = arith.constant 0 : i32
    return %c0_i32, %c0_i32_0 : i32, i32
  }
  func.func @transform_5(%arg0: i32, %arg1: i32) -> (i32, i32, i32) {
    %c0_i32 = arith.constant 0 : i32
    %c0_i32_0 = arith.constant 0 : i32
    %c0_i32_1 = arith.constant 0 : i32
    return %arg0, %c0_i32, %c0_i32_0 : i32, i32, i32
  }
}

</mosaic_0001>

<llo_original>
// kernel: tpu_custom_call.1
$region0: #{tpu_custom_call.1}
  #allocation0 [shape = 'u32[]', space=smem, size = 0x4, offset = 0x4, fixed_abs, tag = 'smem constant byte address 0x4 - core index']
  #allocation1 [shape = 'u32[144,128]{1,0:T(1,128)}', space=vmem, size = 0x12000, scoped, tag = 'internal scratch']
  #allocation2 [shape = 'f32[8,256]{1,0:T(8,128)}', space=vmem, size = 0x2000, scoped, tag = 'scratch operand']
  %s0 = inlined_call_operand.hbm [shape: bf16[8,2048], index: 0, kind: input, shape index: {}]
  %s1 = inlined_call_operand.hbm [shape: bf16[2048,1024], index: 1, kind: input, shape index: {}]
  %s2 = inlined_call_operand.hbm [shape: f32[1,1024], index: 2, kind: input, shape index: {}]
  %s3 = inlined_call_operand.hbm [shape: bf16[1024,256], index: 3, kind: input, shape index: {}]
  %s4 = inlined_call_operand.hbm [shape: f32[1,256], index: 4, kind: input, shape index: {}]
  %s5 = inlined_call_operand.hbm [shape: f32[2,8,256], index: 5, kind: output, shape index: {}]
  %s6 = sld [smem:[#allocation0]]
  $region81: #{tpu_custom_call.1} parent=0
    _
  %s8 = ssub.s32 1, %s6
  %s9 = scalar_select 0, %s8, %s6
  $region1: #{tpu_custom_call.1} parent=0
    #allocation3 [shape = 'u8[32768]{0}', space=vmem, size = 0x8000, scoped, tag = 'input window, operand 0, single buffered']
    #allocation4 [shape = 's32[2]{0}', space=sflag, size = 0x8, scoped, tag = 'scoped memory for tpu_custom_call.1']
    #allocation5 [shape = 's32[2]{0}', space=sflag, size = 0x8, scoped, tag = 'scoped memory for tpu_custom_call.1']
    #allocation6 [shape = 'u8[2097152]{0}', space=vmem, size = 0x200000, scoped, tag = 'input window, operand 1']
    #allocation7 [shape = 's32[2]{0}', space=sflag, size = 0x8, scoped, tag = 'scoped memory for tpu_custom_call.1']
    #allocation8 [shape = 'u8[2048]{0}', space=vmem, size = 0x800, scoped, tag = 'input window, operand 2']
    #allocation9 [shape = 'u8[262144]{0}', space=vmem, size = 0x40000, scoped, tag = 'input window, operand 3']
    #allocation10 [shape = 's32[2]{0}', space=sflag, size = 0x8, scoped, tag = 'scoped memory for tpu_custom_call.1']
    #allocation11 [shape = 'u8[1024]{0}', space=vmem, size = 0x400, scoped, tag = 'input window, operand 4, single buffered']
    #allocation12 [shape = 'u8[16384]{0}', space=vmem, size = 0x4000, scoped, tag = 'output window, operand 0']
    %10 = vsyncpa [#allocation4], 0
    %11 = vsyncpa [#allocation7], 0
    %s12 = scalar_lea.sflag [#allocation7], 1
    %13 = vsyncpa %s12, 0
    %14 = vsyncpa [#allocation10], 0
    %s15 = scalar_lea.sflag [#allocation10], 1
    %16 = vsyncpa %s15, 0
    %17 = vsyncpa [#allocation5], 0
    %s18 = scalar_lea.sflag [#allocation5], 1
    %19 = vsyncpa %s18, 0
    loop: start=0, step=1, limit=6
    $region2: #{tpu_custom_call.1} parent=1 // loop_pre_header
      _
    $region3: #{tpu_custom_call.1} parent=1 // loop_header
      %s21 = sphi 0, %s25
      %p22 = scmp.ge.s32.totalorder %s21, 6
      %s28 = sphi 0, %s40
      %s29 = sphi 0, %s36
      %s30 = sphi 0, %s28
      %s31 = sphi 0, %s29
      %s32 = sphi 0, %s30
      %s33 = sphi 0, %s31
      %s41 = sphi 0, %s41
      %s43 = sphi 0, %s41
      %s44 = sphi 0, %s43
      %s58 = sphi 0, %s44
      %s68 = sphi 0, %s70
      %s71 = sphi 0, %s68
      %s72 = sphi 0, %s71
      %s88 = sphi 0, %s72
      %s98 = sphi 0, %s100
      %s101 = sphi 0, %s98
      %s102 = sphi 0, %s101
      %s118 = sphi 0, %s102
      %s128 = sphi 0, %s130
      %s131 = sphi 0, %s128
      %s132 = sphi 0, %s131
      %s148 = sphi 0, %s132
      %s152 = sphi 0, %s152
      %s154 = sphi 0, %s152
      %s155 = sphi 0, %s154
      %s169 = sphi 0, %s155
      %s175 = sphi 0, %s177
      %s178 = sphi 0, %s175
      %s179 = sphi 0, %s178
      %s195 = sphi 0, %s179
    $region4: #{tpu_custom_call.1} parent=1 // loop_header_branch
      %24 = sbr.rel (%p22) target = $region8
    $region5: #{tpu_custom_call.1} parent=1 // loop_body
      %s26 = ssub.s32 %s21, 1
      %s27 = ssub.s32 %s21, 2
      %s34 = sadd.s32 1, %s29
      %p35 = scmp.ge.s32.totalorder %s34, 2
      %s36 = scalar_select %p35, 0, %s34
      %s37 = sadd.s32 1, %s28
      %s38 = scalar_select %p35, %s37, %s28
      %p39 = scmp.ge.s32.totalorder %s38, 2
      %s40 = scalar_select %p39, 0, %s38
      %s42 = sadd.s32 %s41, 1
      %p45 = scmp.eq.s32.totalorder %s21, 3
      %p46 = scmp.ne.s32.totalorder %s41, %s43
      %p47 = scmp.eq.s32.totalorder %s21, 0
      %p48 = por %p46, %p47
      %p49 = scmp.ne.s32.totalorder %s41, %s43
      %p50 = scmp.eq.s32.totalorder %s26, 3
      %p51 = por %p49, %p50
      %p52 = scmp.ne.s32.totalorder %s43, %s44
      %p53 = scmp.eq.s32.totalorder %s26, 0
      %p54 = por %p52, %p53
      %p55 = scmp.ne.s32.totalorder %s43, %s44
      %p56 = scmp.eq.s32.totalorder %s27, 3
      %p57 = por %p55, %p56
      %p59 = scmp.ne.s32.totalorder %s44, %s58
      %p60 = scmp.eq.s32.totalorder %s27, 0
      %p61 = por %p59, %p60
      %s62 = smul.u32 %s28, 2
      %s63 = sadd.s32 %s62, %s29
      %s64 = smul.u32 %s40, 2
      %s65 = sadd.s32 %s64, %s36
      %s66 = ssub.s32 %s63, %s65
      %p67 = scmp.eq.s32.totalorder %s66, 0
      %s69 = sadd.s32 %s68, 1
      %s70 = scalar_select %p67, %s68, %s69
      %p73 = pneg %p67
      %p74 = scmp.eq.s32.totalorder %s21, 3
      %p75 = por %p73, %p74
      %p76 = scmp.ne.s32.totalorder %s68, %s71
      %p77 = scmp.eq.s32.totalorder %s21, 0
      %p78 = por %p76, %p77
      %p79 = scmp.ne.s32.totalorder %s68, %s71
      %p80 = scmp.eq.s32.totalorder %s26, 3
      %p81 = por %p79, %p80
      %p82 = scmp.ne.s32.totalorder %s71, %s72
      %p83 = scmp.eq.s32.totalorder %s26, 0
      %p84 = por %p82, %p83
      %p85 = scmp.ne.s32.totalorder %s71, %s72
      %p86 = scmp.eq.s32.totalorder %s27, 3
      %p87 = por %p85, %p86
      %p89 = scmp.ne.s32.totalorder %s72, %s88
      %p90 = scmp.eq.s32.totalorder %s27, 0
      %p91 = por %p89, %p90
      %s92 = smul.u32 %s28, 2
      %s93 = sadd.s32 %s92, %s29
      %s94 = smul.u32 %s40, 2
      %s95 = sadd.s32 %s94, %s36
      %s96 = ssub.s32 %s93, %s95
      %p97 = scmp.eq.s32.totalorder %s96, 0
      %s99 = sadd.s32 %s98, 1
      %s100 = scalar_select %p97, %s98, %s99
      %p103 = pneg %p97
      %p104 = scmp.eq.s32.totalorder %s21, 3
      %p105 = por %p103, %p104
      %p106 = scmp.ne.s32.totalorder %s98, %s101
      %p107 = scmp.eq.s32.totalorder %s21, 0
      %p108 = por %p106, %p107
      %p109 = scmp.ne.s32.totalorder %s98, %s101
      %p110 = scmp.eq.s32.totalorder %s26, 3
      %p111 = por %p109, %p110
      %p112 = scmp.ne.s32.totalorder %s101, %s102
      %p113 = scmp.eq.s32.totalorder %s26, 0
      %p114 = por %p112, %p113
      %p115 = scmp.ne.s32.totalorder %s101, %s102
      %p116 = scmp.eq.s32.totalorder %s27, 3
      %p117 = por %p115, %p116
      %p119 = scmp.ne.s32.totalorder %s102, %s118
      %p120 = scmp.eq.s32.totalorder %s27, 0
      %p121 = por %p119, %p120
      %s122 = smul.u32 %s28, 2
      %s123 = sadd.s32 %s122, %s29
      %s124 = smul.u32 %s40, 2
      %s125 = sadd.s32 %s124, %s36
      %s126 = ssub.s32 %s123, %s125
      %p127 = scmp.eq.s32.totalorder %s126, 0
      %s129 = sadd.s32 %s128, 1
      %s130 = scalar_select %p127, %s128, %s129
      %p133 = pneg %p127
      %p134 = scmp.eq.s32.totalorder %s21, 3
      %p135 = por %p133, %p134
      %p136 = scmp.ne.s32.totalorder %s128, %s131
      %p137 = scmp.eq.s32.totalorder %s21, 0
      %p138 = por %p136, %p137
      %p139 = scmp.ne.s32.totalorder %s128, %s131
      %p140 = scmp.eq.s32.totalorder %s26, 3
      %p141 = por %p139, %p140
      %p142 = scmp.ne.s32.totalorder %s131, %s132
      %p143 = scmp.eq.s32.totalorder %s26, 0
      %p144 = por %p142, %p143
      %p145 = scmp.ne.s32.totalorder %s131, %s132
      %p146 = scmp.eq.s32.totalorder %s27, 3
      %p147 = por %p145, %p146
      %p149 = scmp.ne.s32.totalorder %s132, %s148
      %p150 = scmp.eq.s32.totalorder %s27, 0
      %p151 = por %p149, %p150
      %s153 = sadd.s32 %s152, 1
      %p156 = scmp.eq.s32.totalorder %s21, 3
      %p157 = scmp.ne.s32.totalorder %s152, %s154
      %p158 = scmp.eq.s32.totalorder %s21, 0
      %p159 = por %p157, %p158
      %p160 = scmp.ne.s32.totalorder %s152, %s154
      %p161 = scmp.eq.s32.totalorder %s26, 3
      %p162 = por %p160, %p161
      %p163 = scmp.ne.s32.totalorder %s154, %s155
      %p164 = scmp.eq.s32.totalorder %s26, 0
      %p165 = por %p163, %p164
      %p166 = scmp.ne.s32.totalorder %s154, %s155
      %p167 = scmp.eq.s32.totalorder %s27, 3
      %p168 = por %p166, %p167
      %p170 = scmp.ne.s32.totalorder %s155, %s169
      %p171 = scmp.eq.s32.totalorder %s27, 0
      %p172 = por %p170, %p171
      %s173 = ssub.s32 %s28, %s40
      %p174 = scmp.eq.s32.totalorder %s173, 0
      %s176 = sadd.s32 %s175, 1
      %s177 = scalar_select %p174, %s175, %s176
      %p180 = pneg %p174
      %p181 = scmp.eq.s32.totalorder %s21, 3
      %p182 = por %p180, %p181
      %p183 = scmp.ne.s32.totalorder %s175, %s178
      %p184 = scmp.eq.s32.totalorder %s21, 0
      %p185 = por %p183, %p184
      %p186 = scmp.ne.s32.totalorder %s175, %s178
      %p187 = scmp.eq.s32.totalorder %s26, 3
      %p188 = por %p186, %p187
      %p189 = scmp.ne.s32.totalorder %s178, %s179
      %p190 = scmp.eq.s32.totalorder %s26, 0
      %p191 = por %p189, %p190
      %p192 = scmp.ne.s32.totalorder %s178, %s179
      %p193 = scmp.eq.s32.totalorder %s27, 3
      %p194 = por %p192, %p193
      %p196 = scmp.ne.s32.totalorder %s179, %s195
      %p197 = scmp.eq.s32.totalorder %s27, 0
      %p198 = por %p196, %p197
      %p199 = scmp.le.s32.totalorder 1, %s21
      %p200 = scmp.lt.s32.totalorder %s21, 5
      %p201 = pnand %p199, %p200
      %p202 = pneg %p201
      // Predicated region
      $region9: #{tpu_custom_call.1} parent=5 // pred_check
        _
      $region10: #{tpu_custom_call.1} parent=5 // pred_check_branch
        %204 = sbr.rel (%p201) target = $region12
      $region11: #{tpu_custom_call.1} parent=5 // pred_region
        %s205 = ssub.s32 %s21, 1
        // Predicated region
        $region13: #{tpu_custom_call.1} parent=11 // pred_check
          %p206 = pneg %p54
        $region14: #{tpu_custom_call.1} parent=11 // pred_check_branch
          %208 = sbr.rel (%p206) target = $region16
        $region15: #{tpu_custom_call.1} parent=11 // pred_region
          %s210 = ssub.s32 1024, 1024
          %211 = vsyncadd [#allocation4], %s210
          %s213 = sshll.u32 [#allocation3], 4
          %s214 = int_to_ptr.vmem [resolvable:$true] %s213
          %216 = dma.hbm_to_vmem [thread:$0]  %s0, 1024, %s214, [#allocation4]
        $region16: #{tpu_custom_call.1} parent=11 // pred_fallthru
          _
        // Predicated region
        $region17: #{tpu_custom_call.1} parent=11 // pred_check
          %p217 = pneg %p165
        $region18: #{tpu_custom_call.1} parent=11 // pred_check_branch
          %219 = sbr.rel (%p217) target = $region20
        $region19: #{tpu_custom_call.1} parent=11 // pred_region
          %s221 = ssub.s32 32, 32
          %222 = vsyncadd [#allocation10], %s221
          %s224 = sshll.u32 [#allocation11], 4
          %s225 = int_to_ptr.vmem [resolvable:$true] %s224
          %227 = dma.hbm_to_vmem [thread:$0]  %s4, 32, %s225, [#allocation10]
        $region20: #{tpu_custom_call.1} parent=11 // pred_fallthru
          _
      $region12: #{tpu_custom_call.1} parent=5 // pred_fallthru
        _
      %p228 = scmp.lt.s32.totalorder %s21, 4
      // Predicated region
      $region21: #{tpu_custom_call.1} parent=5 // pred_check
        %p229 = pneg %p228
      $region22: #{tpu_custom_call.1} parent=5 // pred_check_branch
        %231 = sbr.rel (%p229) target = $region24
      $region23: #{tpu_custom_call.1} parent=5 // pred_region
        // Predicated region
        $region25: #{tpu_custom_call.1} parent=23 // pred_check
          %p232 = pneg %p78
        $region26: #{tpu_custom_call.1} parent=23 // pred_check_branch
          %234 = sbr.rel (%p232) target = $region28
        $region27: #{tpu_custom_call.1} parent=23 // pred_region
          %s235 = sand.u32 %s21, 1
          %s236 = scalar_lea.sflag [#allocation7], %s235
          %s237 = sand.u32 %s68, 1
          %s238 = smul.addr %s237, 2048
          %s239 = scalar_lea.vmem [#allocation6], %s238
          %s240 = smul.u32 %s28, 2
          %s241 = sadd.s32 %s240, %s29
          %s242 = smul.u32 2, %s241
          %s244 = ssub.s32 32768, 32768
          %245 = vsyncadd %s236, %s244
          %s246 = smul.addr %s242, 64
          %s247 = scalar_lea.hbm %s1, %s246
          %s248 = sshll.u32 %s239, 4
          %s249 = int_to_ptr.vmem [resolvable:$true] %s248
          %254 = dma.hbm_to_vmem [thread:$0]  %s247, 32768, %s249, %s236, 512, 128, 8
        $region28: #{tpu_custom_call.1} parent=23 // pred_fallthru
          _
        // Predicated region
        $region29: #{tpu_custom_call.1} parent=23 // pred_check
          %p255 = pneg %p108
        $region30: #{tpu_custom_call.1} parent=23 // pred_check_branch
          %257 = sbr.rel (%p255) target = $region32
        $region31: #{tpu_custom_call.1} parent=23 // pred_region
          %s258 = sand.u32 %s21, 1
          %s259 = scalar_lea.sflag [#allocation7], %s258
          %s260 = sand.u32 %s98, 1
          %s261 = smul.addr %s260, 2
          %s262 = scalar_lea.vmem [#allocation8], %s261
          %s263 = smul.u32 %s28, 2
          %s264 = sadd.s32 %s263, %s29
          %s265 = smul.u32 2, %s264
          %s267 = ssub.s32 32, 32
          %268 = vsyncadd %s259, %s267
          %s269 = smul.addr %s265, 16
          %s270 = scalar_lea.hbm %s2, %s269
          %s272 = sshll.u32 %s262, 4
          %s273 = int_to_ptr.vmem [resolvable:$true] %s272
          %275 = dma.hbm_to_vmem [thread:$0]  %s270, 32, %s273, %s259
        $region32: #{tpu_custom_call.1} parent=23 // pred_fallthru
          _
        // Predicated region
        $region33: #{tpu_custom_call.1} parent=23 // pred_check
          %p276 = pneg %p138
        $region34: #{tpu_custom_call.1} parent=23 // pred_check_branch
          %278 = sbr.rel (%p276) target = $region36
        $region35: #{tpu_custom_call.1} parent=23 // pred_region
          %s279 = sand.u32 %s21, 1
          %s280 = scalar_lea.sflag [#allocation10], %s279
          %s281 = sand.u32 %s128, 1
          %s282 = smul.addr %s281, 256
          %s283 = scalar_lea.vmem [#allocation9], %s282
          %s284 = smul.u32 %s28, 2
          %s285 = sadd.s32 %s284, %s29
          %s286 = smul.u32 32, %s285
          %s288 = ssub.s32 4096, 4096
          %289 = vsyncadd %s280, %s288
          %s290 = smul.addr %s286, 2
          %s291 = smul.addr %s290, 64
          %s292 = scalar_lea.hbm %s3, %s291
          %s293 = sshll.u32 %s283, 4
          %s294 = int_to_ptr.vmem [resolvable:$true] %s293
          %299 = dma.hbm_to_vmem [thread:$0]  %s292, 4096, %s294, %s280, 128, 128, 8
        $region36: #{tpu_custom_call.1} parent=23 // pred_fallthru
          _
      $region24: #{tpu_custom_call.1} parent=5 // pred_fallthru
        _
      %p300 = scmp.le.s32.totalorder 1, %s21
      %p301 = scmp.lt.s32.totalorder %s21, 5
      %p302 = pnand %p300, %p301
      %p303 = pneg %p302
      // Predicated region
      $region37: #{tpu_custom_call.1} parent=5 // pred_check
        _
      $region38: #{tpu_custom_call.1} parent=5 // pred_check_branch
        %305 = sbr.rel (%p302) target = $region40
      $region39: #{tpu_custom_call.1} parent=5 // pred_region
        %s306 = ssub.s32 %s21, 1
        // Predicated region
        $region41: #{tpu_custom_call.1} parent=39 // pred_check
          %p307 = pneg %p54
        $region42: #{tpu_custom_call.1} parent=39 // pred_check_branch
          %309 = sbr.rel (%p307) target = $region44
        $region43: #{tpu_custom_call.1} parent=39 // pred_region
          %310 = dma.done [#allocation4], 1024
        $region44: #{tpu_custom_call.1} parent=39 // pred_fallthru
          _
        %s311 = sand.u32 %s26, 1
        %s312 = scalar_lea.sflag [#allocation7], %s311
        %s313 = sand.u32 %s71, 1
        %s314 = smul.addr %s313, 2048
        %s315 = scalar_lea.vmem [#allocation6], %s314
        // Predicated region
        $region45: #{tpu_custom_call.1} parent=39 // pred_check
          %p316 = pneg %p84
        $region46: #{tpu_custom_call.1} parent=39 // pred_check_branch
          %318 = sbr.rel (%p316) target = $region48
        $region47: #{tpu_custom_call.1} parent=39 // pred_region
          %319 = dma.done %s312, 32768
        $region48: #{tpu_custom_call.1} parent=39 // pred_fallthru
          _
        %s320 = sand.u32 %s26, 1
        %s321 = scalar_lea.sflag [#allocation7], %s320
        %s322 = sand.u32 %s101, 1
        %s323 = smul.addr %s322, 2
        %s324 = scalar_lea.vmem [#allocation8], %s323
        // Predicated region
        $region49: #{tpu_custom_call.1} parent=39 // pred_check
          %p325 = pneg %p114
        $region50: #{tpu_custom_call.1} parent=39 // pred_check_branch
          %327 = sbr.rel (%p325) target = $region52
        $region51: #{tpu_custom_call.1} parent=39 // pred_region
          %328 = dma.done %s321, 32
        $region52: #{tpu_custom_call.1} parent=39 // pred_fallthru
          _
        %s329 = sand.u32 %s26, 1
        %s330 = scalar_lea.sflag [#allocation10], %s329
        %s331 = sand.u32 %s131, 1
        %s332 = smul.addr %s331, 256
        %s333 = scalar_lea.vmem [#allocation9], %s332
        // Predicated region
        $region53: #{tpu_custom_call.1} parent=39 // pred_check
          %p334 = pneg %p144
        $region54: #{tpu_custom_call.1} parent=39 // pred_check_branch
          %336 = sbr.rel (%p334) target = $region56
        $region55: #{tpu_custom_call.1} parent=39 // pred_region
          %337 = dma.done %s330, 4096
        $region56: #{tpu_custom_call.1} parent=39 // pred_fallthru
          _
        // Predicated region
        $region57: #{tpu_custom_call.1} parent=39 // pred_check
          %p338 = pneg %p165
        $region58: #{tpu_custom_call.1} parent=39 // pred_check_branch
          %340 = sbr.rel (%p338) target = $region60
        $region59: #{tpu_custom_call.1} parent=39 // pred_region
          %341 = dma.done [#allocation10], 32
        $region60: #{tpu_custom_call.1} parent=39 // pred_fallthru
          _
        %p342 = pneg %p54
        %p343 = pneg %p51
        %s344 = sand.u32 %s26, 1
        %s345 = scalar_lea.sflag [#allocation7], %s344
        %s346 = sand.u32 %s71, 1
        %s347 = smul.addr %s346, 2048
        %s348 = scalar_lea.vmem [#allocation6], %s347
        %p349 = pneg %p84
        %p350 = pneg %p81
        %s351 = sand.u32 %s26, 1
        %s352 = scalar_lea.sflag [#allocation7], %s351
        %s353 = sand.u32 %s101, 1
        %s354 = smul.addr %s353, 2
        %s355 = scalar_lea.vmem [#allocation8], %s354
        %p356 = pneg %p114
        %p357 = pneg %p111
        %s358 = sand.u32 %s26, 1
        %s359 = scalar_lea.sflag [#allocation10], %s358
        %s360 = sand.u32 %s131, 1
        %s361 = smul.addr %s360, 256
        %s362 = scalar_lea.vmem [#allocation9], %s361
        %p363 = pneg %p144
        %p364 = pneg %p141
        %p365 = pneg %p165
        %p366 = pneg %p162
        %p367 = pneg %p191
        %p368 = pneg %p188
        %s369 = sand.u32 %s178, 1
        %s370 = scalar_lea.sflag [#allocation5], %s369
        %s371 = sand.u32 %s178, 1
        %s372 = smul.addr %s371, 16
        %s373 = scalar_lea.vmem [#allocation12], %s372
        %s374 = smul.u32 %s30, 2
        %s375 = sadd.s32 %s374, %s31
        %s376 = smul.u32 2, %s375
        %s377 = smul.u32 %s30, 2
        %s378 = sadd.s32 %s377, %s31
        %s379 = smul.u32 2, %s378
        %s380 = smul.u32 %s30, 2
        %s381 = sadd.s32 %s380, %s31
        %s382 = smul.u32 32, %s381
        %p383 = scmp.eq.s32.totalorder %s31, 0
        // Predicated region
        $region61: #{tpu_custom_call.1} parent=39 // pred_check
          %p384 = pneg %p383
        $region62: #{tpu_custom_call.1} parent=39 // pred_check_branch
          %386 = sbr.rel (%p384) target = $region64
        $region63: #{tpu_custom_call.1} parent=39 // pred_region
          %v387 = vld [vmem:[#allocation11] sm:$0x3]
          %p388 = scmp.eq.s32.totalorder %s30, 0
          %s389 = scalar_select %p388, 1, 0
          %s390 = scvt.s32.f32 %s389
          %v391 = vstv %s390
          %v392 = vmul.f32 %v387, %v391
          %v394 = vlaneseq
          %v395 = vshrl.u32 %v394, 7
          %v396 = vsub.s32 0, %v395
          %v397 = vrot.slane %v392, %v396
          %v398 = vlaneseq
          %v399 = vshrl.u32 %v398, 7
          %v400 = vsub.s32 1, %v399
          %v401 = vrot.slane %v392, %v400
          %v404 = vadd.f32 %v397, 0.0
          %v405 = vadd.f32 %v401, 0.0
          %406 = vst [vmem:[#allocation2] sm:$0xff] %v404
          %407 = vst [vmem:[#allocation2 + $0x8] sm:$0xff] %v405
        $region64: #{tpu_custom_call.1} parent=39 // pred_fallthru
          _
        %v408 = vld [vmem:[#allocation3] sm:$0xff]
        %v409 = vld [vmem:[#allocation3 + $0x8] sm:$0xff]
        %v410 = vld [vmem:[#allocation3 + $0x10] sm:$0xff]
        %v411 = vld [vmem:[#allocation3 + $0x18] sm:$0xff]
        %v412 = vld [vmem:[#allocation3 + $0x20] sm:$0xff]
        %v413 = vld [vmem:[#allocation3 + $0x28] sm:$0xff]
        %v414 = vld [vmem:[#allocation3 + $0x30] sm:$0xff]
        %v415 = vld [vmem:[#allocation3 + $0x38] sm:$0xff]
        %v416 = vld [vmem:[%s315] sm:$0xff]
        %v417 = vld [vmem:[%s315 + $0x8] sm:$0xff]
        %v418 = vld [vmem:[%s315 + $0x10] sm:$0xff]
        %v419 = vld [vmem:[%s315 + $0x18] sm:$0xff]
        %v420 = vld [vmem:[%s315 + $0x20] sm:$0xff]
        %v421 = vld [vmem:[%s315 + $0x28] sm:$0xff]
        %v422 = vld [vmem:[%s315 + $0x30] sm:$0xff]
        %v423 = vld [vmem:[%s315 + $0x38] sm:$0xff]
        %v424 = vld [vmem:[%s315 + $0x40] sm:$0xff]
        %v425 = vld [vmem:[%s315 + $0x48] sm:$0xff]
        %v426 = vld [vmem:[%s315 + $0x50] sm:$0xff]
        %v427 = vld [vmem:[%s315 + $0x58] sm:$0xff]
        %v428 = vld [vmem:[%s315 + $0x60] sm:$0xff]
        %v429 = vld [vmem:[%s315 + $0x68] sm:$0xff]
        %v430 = vld [vmem:[%s315 + $0x70] sm:$0xff]
        %v431 = vld [vmem:[%s315 + $0x78] sm:$0xff]
        %v432 = vld [vmem:[%s315 + $0x80] sm:$0xff]
        %v433 = vld [vmem:[%s315 + $0x88] sm:$0xff]
        %v434 = vld [vmem:[%s315 + $0x90] sm:$0xff]
        %v435 = vld [vmem:[%s315 + $0x98] sm:$0xff]
        %v436 = vld [vmem:[%s315 + $0xa0] sm:$0xff]
        %v437 = vld [vmem:[%s315 + $0xa8] sm:$0xff]
        %v438 = vld [vmem:[%s315 + $0xb0] sm:$0xff]
        %v439 = vld [vmem:[%s315 + $0xb8] sm:$0xff]
        %v440 = vld [vmem:[%s315 + $0xc0] sm:$0xff]
        %v441 = vld [vmem:[%s315 + $0xc8] sm:$0xff]
        %v442 = vld [vmem:[%s315 + $0xd0] sm:$0xff]
        %v443 = vld [vmem:[%s315 + $0xd8] sm:$0xff]
        %v444 = vld [vmem:[%s315 + $0xe0] sm:$0xff]
        %v445 = vld [vmem:[%s315 + $0xe8] sm:$0xff]
        %v446 = vld [vmem:[%s315 + $0xf0] sm:$0xff]
        %v447 = vld [vmem:[%s315 + $0xf8] sm:$0xff]
        %v448 = vld [vmem:[%s315 + $0x100] sm:$0xff]
        %v449 = vld [vmem:[%s315 + $0x108] sm:$0xff]
        %v450 = vld [vmem:[%s315 + $0x110] sm:$0xff]
        %v451 = vld [vmem:[%s315 + $0x118] sm:$0xff]
        %v452 = vld [vmem:[%s315 + $0x120] sm:$0xff]
        %v453 = vld [vmem:[%s315 + $0x128] sm:$0xff]
        %v454 = vld [vmem:[%s315 + $0x130] sm:$0xff]
        %v455 = vld [vmem:[%s315 + $0x138] sm:$0xff]
        %v456 = vld [vmem:[%s315 + $0x140] sm:$0xff]
        %v457 = vld [vmem:[%s315 + $0x148] sm:$0xff]
        %v458 = vld [vmem:[%s315 + $0x150] sm:$0xff]
        %v459 = vld [vmem:[%s315 + $0x158] sm:$0xff]
        %v460 = vld [vmem:[%s315 + $0x160] sm:$0xff]
        %v461 = vld [vmem:[%s315 + $0x168] sm:$0xff]
        %v462 = vld [vmem:[%s315 + $0x170] sm:$0xff]
        %v463 = vld [vmem:[%s315 + $0x178] sm:$0xff]
        %v464 = vld [vmem:[%s315 + $0x180] sm:$0xff]
        %v465 = vld [vmem:[%s315 + $0x188] sm:$0xff]
        %v466 = vld [vmem:[%s315 + $0x190] sm:$0xff]
        %v467 = vld [vmem:[%s315 + $0x198] sm:$0xff]
        %v468 = vld [vmem:[%s315 + $0x1a0] sm:$0xff]
        %v469 = vld [vmem:[%s315 + $0x1a8] sm:$0xff]
        %v470 = vld [vmem:[%s315 + $0x1b0] sm:$0xff]
        %v471 = vld [vmem:[%s315 + $0x1b8] sm:$0xff]
        %v472 = vld [vmem:[%s315 + $0x1c0] sm:$0xff]
        %v473 = vld [vmem:[%s315 + $0x1c8] sm:$0xff]
        %v474 = vld [vmem:[%s315 + $0x1d0] sm:$0xff]
        %v475 = vld [vmem:[%s315 + $0x1d8] sm:$0xff]
        %v476 = vld [vmem:[%s315 + $0x1e0] sm:$0xff]
        %v477 = vld [vmem:[%s315 + $0x1e8] sm:$0xff]
        %v478 = vld [vmem:[%s315 + $0x1f0] sm:$0xff]
        %v479 = vld [vmem:[%s315 + $0x1f8] sm:$0xff]
        %v480 = vld [vmem:[%s315 + $0x200] sm:$0xff]
        %v481 = vld [vmem:[%s315 + $0x208] sm:$0xff]
        %v482 = vld [vmem:[%s315 + $0x210] sm:$0xff]
        %v483 = vld [vmem:[%s315 + $0x218] sm:$0xff]
        %v484 = vld [vmem:[%s315 + $0x220] sm:$0xff]
        %v485 = vld [vmem:[%s315 + $0x228] sm:$0xff]
        %v486 = vld [vmem:[%s315 + $0x230] sm:$0xff]
        %v487 = vld [vmem:[%s315 + $0x238] sm:$0xff]
        %v488 = vld [vmem:[%s315 + $0x240] sm:$0xff]
        %v489 = vld [vmem:[%s315 + $0x248] sm:$0xff]
        %v490 = vld [vmem:[%s315 + $0x250] sm:$0xff]
        %v491 = vld [vmem:[%s315 + $0x258] sm:$0xff]
        %v492 = vld [vmem:[%s315 + $0x260] sm:$0xff]
        %v493 = vld [vmem:[%s315 + $0x268] sm:$0xff]
        %v494 = vld [vmem:[%s315 + $0x270] sm:$0xff]
        %v495 = vld [vmem:[%s315 + $0x278] sm:$0xff]
        %v496 = vld [vmem:[%s315 + $0x280] sm:$0xff]
        %v497 = vld [vmem:[%s315 + $0x288] sm:$0xff]
        %v498 = vld [vmem:[%s315 + $0x290] sm:$0xff]
        %v499 = vld [vmem:[%s315 + $0x298] sm:$0xff]
        %v500 = vld [vmem:[%s315 + $0x2a0] sm:$0xff]
        %v501 = vld [vmem:[%s315 + $0x2a8] sm:$0xff]
        %v502 = vld [vmem:[%s315 + $0x2b0] sm:$0xff]
        %v503 = vld [vmem:[%s315 + $0x2b8] sm:$0xff]
        %v504 = vld [vmem:[%s315 + $0x2c0] sm:$0xff]
        %v505 = vld [vmem:[%s315 + $0x2c8] sm:$0xff]
        %v506 = vld [vmem:[%s315 + $0x2d0] sm:$0xff]
        %v507 = vld [vmem:[%s315 + $0x2d8] sm:$0xff]
        %v508 = vld [vmem:[%s315 + $0x2e0] sm:$0xff]
        %v509 = vld [vmem:[%s315 + $0x2e8] sm:$0xff]
        %v510 = vld [vmem:[%s315 + $0x2f0] sm:$0xff]
        %v511 = vld [vmem:[%s315 + $0x2f8] sm:$0xff]
        %v512 = vld [vmem:[%s315 + $0x300] sm:$0xff]
        %v513 = vld [vmem:[%s315 + $0x308] sm:$0xff]
        %v514 = vld [vmem:[%s315 + $0x310] sm:$0xff]
        %v515 = vld [vmem:[%s315 + $0x318] sm:$0xff]
        %v516 = vld [vmem:[%s315 + $0x320] sm:$0xff]
        %v517 = vld [vmem:[%s315 + $0x328] sm:$0xff]
        %v518 = vld [vmem:[%s315 + $0x330] sm:$0xff]
        %v519 = vld [vmem:[%s315 + $0x338] sm:$0xff]
        %v520 = vld [vmem:[%s315 + $0x340] sm:$0xff]
        %v521 = vld [vmem:[%s315 + $0x348] sm:$0xff]
        %v522 = vld [vmem:[%s315 + $0x350] sm:$0xff]
        %v523 = vld [vmem:[%s315 + $0x358] sm:$0xff]
        %v524 = vld [vmem:[%s315 + $0x360] sm:$0xff]
        %v525 = vld [vmem:[%s315 + $0x368] sm:$0xff]
        %v526 = vld [vmem:[%s315 + $0x370] sm:$0xff]
        %v527 = vld [vmem:[%s315 + $0x378] sm:$0xff]
        %v528 = vld [vmem:[%s315 + $0x380] sm:$0xff]
        %v529 = vld [vmem:[%s315 + $0x388] sm:$0xff]
        %v530 = vld [vmem:[%s315 + $0x390] sm:$0xff]
        %v531 = vld [vmem:[%s315 + $0x398] sm:$0xff]
        %v532 = vld [vmem:[%s315 + $0x3a0] sm:$0xff]
        %v533 = vld [vmem:[%s315 + $0x3a8] sm:$0xff]
        %v534 = vld [vmem:[%s315 + $0x3b0] sm:$0xff]
        %v535 = vld [vmem:[%s315 + $0x3b8] sm:$0xff]
        %v536 = vld [vmem:[%s315 + $0x3c0] sm:$0xff]
        %v537 = vld [vmem:[%s315 + $0x3c8] sm:$0xff]
        %v538 = vld [vmem:[%s315 + $0x3d0] sm:$0xff]
        %v539 = vld [vmem:[%s315 + $0x3d8] sm:$0xff]
        %v540 = vld [vmem:[%s315 + $0x3e0] sm:$0xff]
        %v541 = vld [vmem:[%s315 + $0x3e8] sm:$0xff]
        %v542 = vld [vmem:[%s315 + $0x3f0] sm:$0xff]
        %v543 = vld [vmem:[%s315 + $0x3f8] sm:$0xff]
        %v544 = vld [vmem:[%s315 + $0x400] sm:$0xff]
        %v545 = vld [vmem:[%s315 + $0x408] sm:$0xff]
        %v546 = vld [vmem:[%s315 + $0x410] sm:$0xff]
        %v547 = vld [vmem:[%s315 + $0x418] sm:$0xff]
        %v548 = vld [vmem:[%s315 + $0x420] sm:$0xff]
        %v549 = vld [vmem:[%s315 + $0x428] sm:$0xff]
        %v550 = vld [vmem:[%s315 + $0x430] sm:$0xff]
        %v551 = vld [vmem:[%s315 + $0x438] sm:$0xff]
        %v552 = vld [vmem:[%s315 + $0x440] sm:$0xff]
        %v553 = vld [vmem:[%s315 + $0x448] sm:$0xff]
        %v554 = vld [vmem:[%s315 + $0x450] sm:$0xff]
        %v555 = vld [vmem:[%s315 + $0x458] sm:$0xff]
        %v556 = vld [vmem:[%s315 + $0x460] sm:$0xff]
        %v557 = vld [vmem:[%s315 + $0x468] sm:$0xff]
        %v558 = vld [vmem:[%s315 + $0x470] sm:$0xff]
        %v559 = vld [vmem:[%s315 + $0x478] sm:$0xff]
        %v560 = vld [vmem:[%s315 + $0x480] sm:$0xff]
        %v561 = vld [vmem:[%s315 + $0x488] sm:$0xff]
        %v562 = vld [vmem:[%s315 + $0x490] sm:$0xff]
        %v563 = vld [vmem:[%s315 + $0x498] sm:$0xff]
        %v564 = vld [vmem:[%s315 + $0x4a0] sm:$0xff]
        %v565 = vld [vmem:[%s315 + $0x4a8] sm:$0xff]
        %v566 = vld [vmem:[%s315 + $0x4b0] sm:$0xff]
        %v567 = vld [vmem:[%s315 + $0x4b8] sm:$0xff]
        %v568 = vld [vmem:[%s315 + $0x4c0] sm:$0xff]
        %v569 = vld [vmem:[%s315 + $0x4c8] sm:$0xff]
        %v570 = vld [vmem:[%s315 + $0x4d0] sm:$0xff]
        %v571 = vld [vmem:[%s315 + $0x4d8] sm:$0xff]
        %v572 = vld [vmem:[%s315 + $0x4e0] sm:$0xff]
        %v573 = vld [vmem:[%s315 + $0x4e8] sm:$0xff]
        %v574 = vld [vmem:[%s315 + $0x4f0] sm:$0xff]
        %v575 = vld [vmem:[%s315 + $0x4f8] sm:$0xff]
        %v576 = vld [vmem:[%s315 + $0x500] sm:$0xff]
        %v577 = vld [vmem:[%s315 + $0x508] sm:$0xff]
        %v578 = vld [vmem:[%s315 + $0x510] sm:$0xff]
        %v579 = vld [vmem:[%s315 + $0x518] sm:$0xff]
        %v580 = vld [vmem:[%s315 + $0x520] sm:$0xff]
        %v581 = vld [vmem:[%s315 + $0x528] sm:$0xff]
        %v582 = vld [vmem:[%s315 + $0x530] sm:$0xff]
        %v583 = vld [vmem:[%s315 + $0x538] sm:$0xff]
        %v584 = vld [vmem:[%s315 + $0x540] sm:$0xff]
        %v585 = vld [vmem:[%s315 + $0x548] sm:$0xff]
        %v586 = vld [vmem:[%s315 + $0x550] sm:$0xff]
        %v587 = vld [vmem:[%s315 + $0x558] sm:$0xff]
        %v588 = vld [vmem:[%s315 + $0x560] sm:$0xff]
        %v589 = vld [vmem:[%s315 + $0x568] sm:$0xff]
        %v590 = vld [vmem:[%s315 + $0x570] sm:$0xff]
        %v591 = vld [vmem:[%s315 + $0x578] sm:$0xff]
        %v592 = vld [vmem:[%s315 + $0x580] sm:$0xff]
        %v593 = vld [vmem:[%s315 + $0x588] sm:$0xff]
        %v594 = vld [vmem:[%s315 + $0x590] sm:$0xff]
        %v595 = vld [vmem:[%s315 + $0x598] sm:$0xff]
        %v596 = vld [vmem:[%s315 + $0x5a0] sm:$0xff]
        %v597 = vld [vmem:[%s315 + $0x5a8] sm:$0xff]
        %v598 = vld [vmem:[%s315 + $0x5b0] sm:$0xff]
        %v599 = vld [vmem:[%s315 + $0x5b8] sm:$0xff]
        %v600 = vld [vmem:[%s315 + $0x5c0] sm:$0xff]
        %v601 = vld [vmem:[%s315 + $0x5c8] sm:$0xff]
        %v602 = vld [vmem:[%s315 + $0x5d0] sm:$0xff]
        %v603 = vld [vmem:[%s315 + $0x5d8] sm:$0xff]
        %v604 = vld [vmem:[%s315 + $0x5e0] sm:$0xff]
        %v605 = vld [vmem:[%s315 + $0x5e8] sm:$0xff]
        %v606 = vld [vmem:[%s315 + $0x5f0] sm:$0xff]
        %v607 = vld [vmem:[%s315 + $0x5f8] sm:$0xff]
        %v608 = vld [vmem:[%s315 + $0x600] sm:$0xff]
        %v609 = vld [vmem:[%s315 + $0x608] sm:$0xff]
        %v610 = vld [vmem:[%s315 + $0x610] sm:$0xff]
        %v611 = vld [vmem:[%s315 + $0x618] sm:$0xff]
        %v612 = vld [vmem:[%s315 + $0x620] sm:$0xff]
        %v613 = vld [vmem:[%s315 + $0x628] sm:$0xff]
        %v614 = vld [vmem:[%s315 + $0x630] sm:$0xff]
        %v615 = vld [vmem:[%s315 + $0x638] sm:$0xff]
        %v616 = vld [vmem:[%s315 + $0x640] sm:$0xff]
        %v617 = vld [vmem:[%s315 + $0x648] sm:$0xff]
        %v618 = vld [vmem:[%s315 + $0x650] sm:$0xff]
        %v619 = vld [vmem:[%s315 + $0x658] sm:$0xff]
        %v620 = vld [vmem:[%s315 + $0x660] sm:$0xff]
        %v621 = vld [vmem:[%s315 + $0x668] sm:$0xff]
        %v622 = vld [vmem:[%s315 + $0x670] sm:$0xff]
        %v623 = vld [vmem:[%s315 + $0x678] sm:$0xff]
        %v624 = vld [vmem:[%s315 + $0x680] sm:$0xff]
        %v625 = vld [vmem:[%s315 + $0x688] sm:$0xff]
        %v626 = vld [vmem:[%s315 + $0x690] sm:$0xff]
        %v627 = vld [vmem:[%s315 + $0x698] sm:$0xff]
        %v628 = vld [vmem:[%s315 + $0x6a0] sm:$0xff]
        %v629 = vld [vmem:[%s315 + $0x6a8] sm:$0xff]
        %v630 = vld [vmem:[%s315 + $0x6b0] sm:$0xff]
        %v631 = vld [vmem:[%s315 + $0x6b8] sm:$0xff]
        %v632 = vld [vmem:[%s315 + $0x6c0] sm:$0xff]
        %v633 = vld [vmem:[%s315 + $0x6c8] sm:$0xff]
        %v634 = vld [vmem:[%s315 + $0x6d0] sm:$0xff]
        %v635 = vld [vmem:[%s315 + $0x6d8] sm:$0xff]
        %v636 = vld [vmem:[%s315 + $0x6e0] sm:$0xff]
        %v637 = vld [vmem:[%s315 + $0x6e8] sm:$0xff]
        %v638 = vld [vmem:[%s315 + $0x6f0] sm:$0xff]
        %v639 = vld [vmem:[%s315 + $0x6f8] sm:$0xff]
        %v640 = vld [vmem:[%s315 + $0x700] sm:$0xff]
        %v641 = vld [vmem:[%s315 + $0x708] sm:$0xff]
        %v642 = vld [vmem:[%s315 + $0x710] sm:$0xff]
        %v643 = vld [vmem:[%s315 + $0x718] sm:$0xff]
        %v644 = vld [vmem:[%s315 + $0x720] sm:$0xff]
        %v645 = vld [vmem:[%s315 + $0x728] sm:$0xff]
        %v646 = vld [vmem:[%s315 + $0x730] sm:$0xff]
        %v647 = vld [vmem:[%s315 + $0x738] sm:$0xff]
        %v648 = vld [vmem:[%s315 + $0x740] sm:$0xff]
        %v649 = vld [vmem:[%s315 + $0x748] sm:$0xff]
        %v650 = vld [vmem:[%s315 + $0x750] sm:$0xff]
        %v651 = vld [vmem:[%s315 + $0x758] sm:$0xff]
        %v652 = vld [vmem:[%s315 + $0x760] sm:$0xff]
        %v653 = vld [vmem:[%s315 + $0x768] sm:$0xff]
        %v654 = vld [vmem:[%s315 + $0x770] sm:$0xff]
        %v655 = vld [vmem:[%s315 + $0x778] sm:$0xff]
        %v656 = vld [vmem:[%s315 + $0x780] sm:$0xff]
        %v657 = vld [vmem:[%s315 + $0x788] sm:$0xff]
        %v658 = vld [vmem:[%s315 + $0x790] sm:$0xff]
        %v659 = vld [vmem:[%s315 + $0x798] sm:$0xff]
        %v660 = vld [vmem:[%s315 + $0x7a0] sm:$0xff]
        %v661 = vld [vmem:[%s315 + $0x7a8] sm:$0xff]
        %v662 = vld [vmem:[%s315 + $0x7b0] sm:$0xff]
        %v663 = vld [vmem:[%s315 + $0x7b8] sm:$0xff]
        %v664 = vld [vmem:[%s315 + $0x7c0] sm:$0xff]
        %v665 = vld [vmem:[%s315 + $0x7c8] sm:$0xff]
        %v666 = vld [vmem:[%s315 + $0x7d0] sm:$0xff]
        %v667 = vld [vmem:[%s315 + $0x7d8] sm:$0xff]
        %v668 = vld [vmem:[%s315 + $0x7e0] sm:$0xff]
        %v669 = vld [vmem:[%s315 + $0x7e8] sm:$0xff]
        %v670 = vld [vmem:[%s315 + $0x7f0] sm:$0xff]
        %v671 = vld [vmem:[%s315 + $0x7f8] sm:$0xff]
        %v672 = vld [vmem:[%s324] sm:$0x3]
        %v674 = vlaneseq
        %v675 = vshrl.u32 %v674, 7
        %v676 = vsub.s32 0, %v675
        %v677 = vrot.slane %v672, %v676
        %v678 = vlaneseq
        %v679 = vshrl.u32 %v678, 7
        %v680 = vsub.s32 1, %v679
        %v681 = vrot.slane %v672, %v680
        %v692 = vunpack.c.l.b16 %v408
        %v693 = vunpack.c.h.b16 %v408
        %v694 = vunpack.c.l.b16 %v409
        %v695 = vunpack.c.h.b16 %v409
        %v696 = vunpack.c.l.b16 %v410
        %v697 = vunpack.c.h.b16 %v410
        %v698 = vunpack.c.l.b16 %v411
        %v699 = vunpack.c.h.b16 %v411
        %v700 = vunpack.c.l.b16 %v412
        %v701 = vunpack.c.h.b16 %v412
        %v702 = vunpack.c.l.b16 %v413
        %v703 = vunpack.c.h.b16 %v413
        %v704 = vunpack.c.l.b16 %v414
        %v705 = vunpack.c.h.b16 %v414
        %v706 = vunpack.c.l.b16 %v415
        %v707 = vunpack.c.h.b16 %v415
        %v708 = vpack.c.b16 %v692, %v692
        %v709 = vpack.c.b16 %v693, %v693
        %v710 = vpack.c.b16 %v694, %v694
        %v711 = vpack.c.b16 %v695, %v695
        %v712 = vpack.c.b16 %v696, %v696
        %v713 = vpack.c.b16 %v697, %v697
        %v714 = vpack.c.b16 %v698, %v698
        %v715 = vpack.c.b16 %v699, %v699
        %v716 = vpack.c.b16 %v700, %v700
        %v717 = vpack.c.b16 %v701, %v701
        %v718 = vpack.c.b16 %v702, %v702
        %v719 = vpack.c.b16 %v703, %v703
        %v720 = vpack.c.b16 %v704, %v704
        %v721 = vpack.c.b16 %v705, %v705
        %v722 = vpack.c.b16 %v706, %v706
        %v723 = vpack.c.b16 %v707, %v707
        %v996 = vunpack.c.l.b16 %v416
        %v997 = vunpack.c.h.b16 %v416
        %v998 = vunpack.c.l.b16 %v417
        %v999 = vunpack.c.h.b16 %v417
        %v1000 = vunpack.c.l.b16 %v418
        %v1001 = vunpack.c.h.b16 %v418
        %v1002 = vunpack.c.l.b16 %v419
        %v1003 = vunpack.c.h.b16 %v419
        %v1004 = vunpack.c.l.b16 %v420
        %v1005 = vunpack.c.h.b16 %v420
        %v1006 = vunpack.c.l.b16 %v421
        %v1007 = vunpack.c.h.b16 %v421
        %v1008 = vunpack.c.l.b16 %v422
        %v1009 = vunpack.c.h.b16 %v422
        %v1010 = vunpack.c.l.b16 %v423
        %v1011 = vunpack.c.h.b16 %v423
        %v1012 = vunpack.c.l.b16 %v424
        %v1013 = vunpack.c.h.b16 %v424
        %v1014 = vunpack.c.l.b16 %v425
        %v1015 = vunpack.c.h.b16 %v425
        %v1016 = vunpack.c.l.b16 %v426
        %v1017 = vunpack.c.h.b16 %v426
        %v1018 = vunpack.c.l.b16 %v427
        %v1019 = vunpack.c.h.b16 %v427
        %v1020 = vunpack.c.l.b16 %v428
        %v1021 = vunpack.c.h.b16 %v428
        %v1022 = vunpack.c.l.b16 %v429
        %v1023 = vunpack.c.h.b16 %v429
        %v1024 = vunpack.c.l.b16 %v430
        %v1025 = vunpack.c.h.b16 %v430
        %v1026 = vunpack.c.l.b16 %v431
        %v1027 = vunpack.c.h.b16 %v431
        %v1028 = vunpack.c.l.b16 %v432
        %v1029 = vunpack.c.h.b16 %v432
        %v1030 = vunpack.c.l.b16 %v433
        %v1031 = vunpack.c.h.b16 %v433
        %v1032 = vunpack.c.l.b16 %v434
        %v1033 = vunpack.c.h.b16 %v434
        %v1034 = vunpack.c.l.b16 %v435
        %v1035 = vunpack.c.h.b16 %v435
        %v1036 = vunpack.c.l.b16 %v436
        %v1037 = vunpack.c.h.b16 %v436
        %v1038 = vunpack.c.l.b16 %v437
        %v1039 = vunpack.c.h.b16 %v437
        %v1040 = vunpack.c.l.b16 %v438
        %v1041 = vunpack.c.h.b16 %v438
        %v1042 = vunpack.c.l.b16 %v439
        %v1043 = vunpack.c.h.b16 %v439
        %v1044 = vunpack.c.l.b16 %v440
        %v1045 = vunpack.c.h.b16 %v440
        %v1046 = vunpack.c.l.b16 %v441
        %v1047 = vunpack.c.h.b16 %v441
        %v1048 = vunpack.c.l.b16 %v442
        %v1049 = vunpack.c.h.b16 %v442
        %v1050 = vunpack.c.l.b16 %v443
        %v1051 = vunpack.c.h.b16 %v443
        %v1052 = vunpack.c.l.b16 %v444
        %v1053 = vunpack.c.h.b16 %v444
        %v1054 = vunpack.c.l.b16 %v445
        %v1055 = vunpack.c.h.b16 %v445
        %v1056 = vunpack.c.l.b16 %v446
        %v1057 = vunpack.c.h.b16 %v446
        %v1058 = vunpack.c.l.b16 %v447
        %v1059 = vunpack.c.h.b16 %v447
        %v1060 = vunpack.c.l.b16 %v448
        %v1061 = vunpack.c.h.b16 %v448
        %v1062 = vunpack.c.l.b16 %v449
        %v1063 = vunpack.c.h.b16 %v449
        %v1064 = vunpack.c.l.b16 %v450
        %v1065 = vunpack.c.h.b16 %v450
        %v1066 = vunpack.c.l.b16 %v451
        %v1067 = vunpack.c.h.b16 %v451
        %v1068 = vunpack.c.l.b16 %v452
        %v1069 = vunpack.c.h.b16 %v452
        %v1070 = vunpack.c.l.b16 %v453
        %v1071 = vunpack.c.h.b16 %v453
        %v1072 = vunpack.c.l.b16 %v454
        %v1073 = vunpack.c.h.b16 %v454
        %v1074 = vunpack.c.l.b16 %v455
        %v1075 = vunpack.c.h.b16 %v455
        %v1076 = vunpack.c.l.b16 %v456
        %v1077 = vunpack.c.h.b16 %v456
        %v1078 = vunpack.c.l.b16 %v457
        %v1079 = vunpack.c.h.b16 %v457
        %v1080 = vunpack.c.l.b16 %v458
        %v1081 = vunpack.c.h.b16 %v458
        %v1082 = vunpack.c.l.b16 %v459
        %v1083 = vunpack.c.h.b16 %v459
        %v1084 = vunpack.c.l.b16 %v460
        %v1085 = vunpack.c.h.b16 %v460
        %v1086 = vunpack.c.l.b16 %v461
        %v1087 = vunpack.c.h.b16 %v461
        %v1088 = vunpack.c.l.b16 %v462
        %v1089 = vunpack.c.h.b16 %v462
        %v1090 = vunpack.c.l.b16 %v463
        %v1091 = vunpack.c.h.b16 %v463
        %v1092 = vunpack.c.l.b16 %v464
        %v1093 = vunpack.c.h.b16 %v464
        %v1094 = vunpack.c.l.b16 %v465
        %v1095 = vunpack.c.h.b16 %v465
        %v1096 = vunpack.c.l.b16 %v466
        %v1097 = vunpack.c.h.b16 %v466
        %v1098 = vunpack.c.l.b16 %v467
        %v1099 = vunpack.c.h.b16 %v467
        %v1100 = vunpack.c.l.b16 %v468
        %v1101 = vunpack.c.h.b16 %v468
        %v1102 = vunpack.c.l.b16 %v469
        %v1103 = vunpack.c.h.b16 %v469
        %v1104 = vunpack.c.l.b16 %v470
        %v1105 = vunpack.c.h.b16 %v470
        %v1106 = vunpack.c.l.b16 %v471
        %v1107 = vunpack.c.h.b16 %v471
        %v1108 = vunpack.c.l.b16 %v472
        %v1109 = vunpack.c.h.b16 %v472
        %v1110 = vunpack.c.l.b16 %v473
        %v1111 = vunpack.c.h.b16 %v473
        %v1112 = vunpack.c.l.b16 %v474
        %v1113 = vunpack.c.h.b16 %v474
        %v1114 = vunpack.c.l.b16 %v475
        %v1115 = vunpack.c.h.b16 %v475
        %v1116 = vunpack.c.l.b16 %v476
        %v1117 = vunpack.c.h.b16 %v476
        %v1118 = vunpack.c.l.b16 %v477
        %v1119 = vunpack.c.h.b16 %v477
        %v1120 = vunpack.c.l.b16 %v478
        %v1121 = vunpack.c.h.b16 %v478
        %v1122 = vunpack.c.l.b16 %v479
        %v1123 = vunpack.c.h.b16 %v479
        %v1124 = vunpack.c.l.b16 %v480
        %v1125 = vunpack.c.h.b16 %v480
        %v1126 = vunpack.c.l.b16 %v481
        %v1127 = vunpack.c.h.b16 %v481
        %v1128 = vunpack.c.l.b16 %v482
        %v1129 = vunpack.c.h.b16 %v482
        %v1130 = vunpack.c.l.b16 %v483
        %v1131 = vunpack.c.h.b16 %v483
        %v1132 = vunpack.c.l.b16 %v484
        %v1133 = vunpack.c.h.b16 %v484
        %v1134 = vunpack.c.l.b16 %v485
        %v1135 = vunpack.c.h.b16 %v485
        %v1136 = vunpack.c.l.b16 %v486
        %v1137 = vunpack.c.h.b16 %v486
        %v1138 = vunpack.c.l.b16 %v487
        %v1139 = vunpack.c.h.b16 %v487
        %v1140 = vunpack.c.l.b16 %v488
        %v1141 = vunpack.c.h.b16 %v488
        %v1142 = vunpack.c.l.b16 %v489
        %v1143 = vunpack.c.h.b16 %v489
        %v1144 = vunpack.c.l.b16 %v490
        %v1145 = vunpack.c.h.b16 %v490
        %v1146 = vunpack.c.l.b16 %v491
        %v1147 = vunpack.c.h.b16 %v491
        %v1148 = vunpack.c.l.b16 %v492
        %v1149 = vunpack.c.h.b16 %v492
        %v1150 = vunpack.c.l.b16 %v493
        %v1151 = vunpack.c.h.b16 %v493
        %v1152 = vunpack.c.l.b16 %v494
        %v1153 = vunpack.c.h.b16 %v494
        %v1154 = vunpack.c.l.b16 %v495
        %v1155 = vunpack.c.h.b16 %v495
        %v1156 = vunpack.c.l.b16 %v496
        %v1157 = vunpack.c.h.b16 %v496
        %v1158 = vunpack.c.l.b16 %v497
        %v1159 = vunpack.c.h.b16 %v497
        %v1160 = vunpack.c.l.b16 %v498
        %v1161 = vunpack.c.h.b16 %v498
        %v1162 = vunpack.c.l.b16 %v499
        %v1163 = vunpack.c.h.b16 %v499
        %v1164 = vunpack.c.l.b16 %v500
        %v1165 = vunpack.c.h.b16 %v500
        %v1166 = vunpack.c.l.b16 %v501
        %v1167 = vunpack.c.h.b16 %v501
        %v1168 = vunpack.c.l.b16 %v502
        %v1169 = vunpack.c.h.b16 %v502
        %v1170 = vunpack.c.l.b16 %v503
        %v1171 = vunpack.c.h.b16 %v503
        %v1172 = vunpack.c.l.b16 %v504
        %v1173 = vunpack.c.h.b16 %v504
        %v1174 = vunpack.c.l.b16 %v505
        %v1175 = vunpack.c.h.b16 %v505
        %v1176 = vunpack.c.l.b16 %v506
        %v1177 = vunpack.c.h.b16 %v506
        %v1178 = vunpack.c.l.b16 %v507
        %v1179 = vunpack.c.h.b16 %v507
        %v1180 = vunpack.c.l.b16 %v508
        %v1181 = vunpack.c.h.b16 %v508
        %v1182 = vunpack.c.l.b16 %v509
        %v1183 = vunpack.c.h.b16 %v509
        %v1184 = vunpack.c.l.b16 %v510
        %v1185 = vunpack.c.h.b16 %v510
        %v1186 = vunpack.c.l.b16 %v511
        %v1187 = vunpack.c.h.b16 %v511
        %v1188 = vunpack.c.l.b16 %v512
        %v1189 = vunpack.c.h.b16 %v512
        %v1190 = vunpack.c.l.b16 %v513
        %v1191 = vunpack.c.h.b16 %v513
        %v1192 = vunpack.c.l.b16 %v514
        %v1193 = vunpack.c.h.b16 %v514
        %v1194 = vunpack.c.l.b16 %v515
        %v1195 = vunpack.c.h.b16 %v515
        %v1196 = vunpack.c.l.b16 %v516
        %v1197 = vunpack.c.h.b16 %v516
        %v1198 = vunpack.c.l.b16 %v517
        %v1199 = vunpack.c.h.b16 %v517
        %v1200 = vunpack.c.l.b16 %v518
        %v1201 = vunpack.c.h.b16 %v518
        %v1202 = vunpack.c.l.b16 %v519
        %v1203 = vunpack.c.h.b16 %v519
        %v1204 = vunpack.c.l.b16 %v520
        %v1205 = vunpack.c.h.b16 %v520
        %v1206 = vunpack.c.l.b16 %v521
        %v1207 = vunpack.c.h.b16 %v521
        %v1208 = vunpack.c.l.b16 %v522
        %v1209 = vunpack.c.h.b16 %v522
        %v1210 = vunpack.c.l.b16 %v523
        %v1211 = vunpack.c.h.b16 %v523
        %v1212 = vunpack.c.l.b16 %v524
        %v1213 = vunpack.c.h.b16 %v524
        %v1214 = vunpack.c.l.b16 %v525
        %v1215 = vunpack.c.h.b16 %v525
        %v1216 = vunpack.c.l.b16 %v526
        %v1217 = vunpack.c.h.b16 %v526
        %v1218 = vunpack.c.l.b16 %v527
        %v1219 = vunpack.c.h.b16 %v527
        %v1220 = vunpack.c.l.b16 %v528
        %v1221 = vunpack.c.h.b16 %v528
        %v1222 = vunpack.c.l.b16 %v529
        %v1223 = vunpack.c.h.b16 %v529
        %v1224 = vunpack.c.l.b16 %v530
        %v1225 = vunpack.c.h.b16 %v530
        %v1226 = vunpack.c.l.b16 %v531
        %v1227 = vunpack.c.h.b16 %v531
        %v1228 = vunpack.c.l.b16 %v532
        %v1229 = vunpack.c.h.b16 %v532
        %v1230 = vunpack.c.l.b16 %v533
        %v1231 = vunpack.c.h.b16 %v533
        %v1232 = vunpack.c.l.b16 %v534
        %v1233 = vunpack.c.h.b16 %v534
        %v1234 = vunpack.c.l.b16 %v535
        %v1235 = vunpack.c.h.b16 %v535
        %v1236 = vunpack.c.l.b16 %v536
        %v1237 = vunpack.c.h.b16 %v536
        %v1238 = vunpack.c.l.b16 %v537
        %v1239 = vunpack.c.h.b16 %v537
        %v1240 = vunpack.c.l.b16 %v538
        %v1241 = vunpack.c.h.b16 %v538
        %v1242 = vunpack.c.l.b16 %v539
        %v1243 = vunpack.c.h.b16 %v539
        %v1244 = vunpack.c.l.b16 %v540
        %v1245 = vunpack.c.h.b16 %v540
        %v1246 = vunpack.c.l.b16 %v541
        %v1247 = vunpack.c.h.b16 %v541
        %v1248 = vunpack.c.l.b16 %v542
        %v1249 = vunpack.c.h.b16 %v542
        %v1250 = vunpack.c.l.b16 %v543
        %v1251 = vunpack.c.h.b16 %v543
        %v1252 = vunpack.c.l.b16 %v544
        %v1253 = vunpack.c.h.b16 %v544
        %v1254 = vunpack.c.l.b16 %v545
        %v1255 = vunpack.c.h.b16 %v545
        %v1256 = vunpack.c.l.b16 %v546
        %v1257 = vunpack.c.h.b16 %v546
        %v1258 = vunpack.c.l.b16 %v547
        %v1259 = vunpack.c.h.b16 %v547
        %v1260 = vunpack.c.l.b16 %v548
        %v1261 = vunpack.c.h.b16 %v548
        %v1262 = vunpack.c.l.b16 %v549
        %v1263 = vunpack.c.h.b16 %v549
        %v1264 = vunpack.c.l.b16 %v550
        %v1265 = vunpack.c.h.b16 %v550
        %v1266 = vunpack.c.l.b16 %v551
        %v1267 = vunpack.c.h.b16 %v551
        %v1268 = vunpack.c.l.b16 %v552
        %v1269 = vunpack.c.h.b16 %v552
        %v1270 = vunpack.c.l.b16 %v553
        %v1271 = vunpack.c.h.b16 %v553
        %v1272 = vunpack.c.l.b16 %v554
        %v1273 = vunpack.c.h.b16 %v554
        %v1274 = vunpack.c.l.b16 %v555
        %v1275 = vunpack.c.h.b16 %v555
        %v1276 = vunpack.c.l.b16 %v556
        %v1277 = vunpack.c.h.b16 %v556
        %v1278 = vunpack.c.l.b16 %v557
        %v1279 = vunpack.c.h.b16 %v557
        %v1280 = vunpack.c.l.b16 %v558
        %v1281 = vunpack.c.h.b16 %v558
        %v1282 = vunpack.c.l.b16 %v559
        %v1283 = vunpack.c.h.b16 %v559
        %v1284 = vunpack.c.l.b16 %v560
        %v1285 = vunpack.c.h.b16 %v560
        %v1286 = vunpack.c.l.b16 %v561
        %v1287 = vunpack.c.h.b16 %v561
        %v1288 = vunpack.c.l.b16 %v562
        %v1289 = vunpack.c.h.b16 %v562
        %v1290 = vunpack.c.l.b16 %v563
        %v1291 = vunpack.c.h.b16 %v563
        %v1292 = vunpack.c.l.b16 %v564
        %v1293 = vunpack.c.h.b16 %v564
        %v1294 = vunpack.c.l.b16 %v565
        %v1295 = vunpack.c.h.b16 %v565
        %v1296 = vunpack.c.l.b16 %v566
        %v1297 = vunpack.c.h.b16 %v566
        %v1298 = vunpack.c.l.b16 %v567
        %v1299 = vunpack.c.h.b16 %v567
        %v1300 = vunpack.c.l.b16 %v568
        %v1301 = vunpack.c.h.b16 %v568
        %v1302 = vunpack.c.l.b16 %v569
        %v1303 = vunpack.c.h.b16 %v569
        %v1304 = vunpack.c.l.b16 %v570
        %v1305 = vunpack.c.h.b16 %v570
        %v1306 = vunpack.c.l.b16 %v571
        %v1307 = vunpack.c.h.b16 %v571
        %v1308 = vunpack.c.l.b16 %v572
        %v1309 = vunpack.c.h.b16 %v572
        %v1310 = vunpack.c.l.b16 %v573
        %v1311 = vunpack.c.h.b16 %v573
        %v1312 = vunpack.c.l.b16 %v574
        %v1313 = vunpack.c.h.b16 %v574
        %v1314 = vunpack.c.l.b16 %v575
        %v1315 = vunpack.c.h.b16 %v575
        %v1316 = vunpack.c.l.b16 %v576
        %v1317 = vunpack.c.h.b16 %v576
        %v1318 = vunpack.c.l.b16 %v577
        %v1319 = vunpack.c.h.b16 %v577
        %v1320 = vunpack.c.l.b16 %v578
        %v1321 = vunpack.c.h.b16 %v578
        %v1322 = vunpack.c.l.b16 %v579
        %v1323 = vunpack.c.h.b16 %v579
        %v1324 = vunpack.c.l.b16 %v580
        %v1325 = vunpack.c.h.b16 %v580
        %v1326 = vunpack.c.l.b16 %v581
        %v1327 = vunpack.c.h.b16 %v581
        %v1328 = vunpack.c.l.b16 %v582
        %v1329 = vunpack.c.h.b16 %v582
        %v1330 = vunpack.c.l.b16 %v583
        %v1331 = vunpack.c.h.b16 %v583
        %v1332 = vunpack.c.l.b16 %v584
        %v1333 = vunpack.c.h.b16 %v584
        %v1334 = vunpack.c.l.b16 %v585
        %v1335 = vunpack.c.h.b16 %v585
        %v1336 = vunpack.c.l.b16 %v586
        %v1337 = vunpack.c.h.b16 %v586
        %v1338 = vunpack.c.l.b16 %v587
        %v1339 = vunpack.c.h.b16 %v587
        %v1340 = vunpack.c.l.b16 %v588
        %v1341 = vunpack.c.h.b16 %v588
        %v1342 = vunpack.c.l.b16 %v589
        %v1343 = vunpack.c.h.b16 %v589
        %v1344 = vunpack.c.l.b16 %v590
        %v1345 = vunpack.c.h.b16 %v590
        %v1346 = vunpack.c.l.b16 %v591
        %v1347 = vunpack.c.h.b16 %v591
        %v1348 = vunpack.c.l.b16 %v592
        %v1349 = vunpack.c.h.b16 %v592
        %v1350 = vunpack.c.l.b16 %v593
        %v1351 = vunpack.c.h.b16 %v593
        %v1352 = vunpack.c.l.b16 %v594
        %v1353 = vunpack.c.h.b16 %v594
        %v1354 = vunpack.c.l.b16 %v595
        %v1355 = vunpack.c.h.b16 %v595
        %v1356 = vunpack.c.l.b16 %v596
        %v1357 = vunpack.c.h.b16 %v596
        %v1358 = vunpack.c.l.b16 %v597
        %v1359 = vunpack.c.h.b16 %v597
        %v1360 = vunpack.c.l.b16 %v598
        %v1361 = vunpack.c.h.b16 %v598
        %v1362 = vunpack.c.l.b16 %v599
        %v1363 = vunpack.c.h.b16 %v599
        %v1364 = vunpack.c.l.b16 %v600
        %v1365 = vunpack.c.h.b16 %v600
        %v1366 = vunpack.c.l.b16 %v601
        %v1367 = vunpack.c.h.b16 %v601
        %v1368 = vunpack.c.l.b16 %v602
        %v1369 = vunpack.c.h.b16 %v602
        %v1370 = vunpack.c.l.b16 %v603
        %v1371 = vunpack.c.h.b16 %v603
        %v1372 = vunpack.c.l.b16 %v604
        %v1373 = vunpack.c.h.b16 %v604
        %v1374 = vunpack.c.l.b16 %v605
        %v1375 = vunpack.c.h.b16 %v605
        %v1376 = vunpack.c.l.b16 %v606
        %v1377 = vunpack.c.h.b16 %v606
        %v1378 = vunpack.c.l.b16 %v607
        %v1379 = vunpack.c.h.b16 %v607
        %v1380 = vunpack.c.l.b16 %v608
        %v1381 = vunpack.c.h.b16 %v608
        %v1382 = vunpack.c.l.b16 %v609
        %v1383 = vunpack.c.h.b16 %v609
        %v1384 = vunpack.c.l.b16 %v610
        %v1385 = vunpack.c.h.b16 %v610
        %v1386 = vunpack.c.l.b16 %v611
        %v1387 = vunpack.c.h.b16 %v611
        %v1388 = vunpack.c.l.b16 %v612
        %v1389 = vunpack.c.h.b16 %v612
        %v1390 = vunpack.c.l.b16 %v613
        %v1391 = vunpack.c.h.b16 %v613
        %v1392 = vunpack.c.l.b16 %v614
        %v1393 = vunpack.c.h.b16 %v614
        %v1394 = vunpack.c.l.b16 %v615
        %v1395 = vunpack.c.h.b16 %v615
        %v1396 = vunpack.c.l.b16 %v616
        %v1397 = vunpack.c.h.b16 %v616
        %v1398 = vunpack.c.l.b16 %v617
        %v1399 = vunpack.c.h.b16 %v617
        %v1400 = vunpack.c.l.b16 %v618
        %v1401 = vunpack.c.h.b16 %v618
        %v1402 = vunpack.c.l.b16 %v619
        %v1403 = vunpack.c.h.b16 %v619
        %v1404 = vunpack.c.l.b16 %v620
        %v1405 = vunpack.c.h.b16 %v620
        %v1406 = vunpack.c.l.b16 %v621
        %v1407 = vunpack.c.h.b16 %v621
        %v1408 = vunpack.c.l.b16 %v622
        %v1409 = vunpack.c.h.b16 %v622
        %v1410 = vunpack.c.l.b16 %v623
        %v1411 = vunpack.c.h.b16 %v623
        %v1412 = vunpack.c.l.b16 %v624
        %v1413 = vunpack.c.h.b16 %v624
        %v1414 = vunpack.c.l.b16 %v625
        %v1415 = vunpack.c.h.b16 %v625
        %v1416 = vunpack.c.l.b16 %v626
        %v1417 = vunpack.c.h.b16 %v626
        %v1418 = vunpack.c.l.b16 %v627
        %v1419 = vunpack.c.h.b16 %v627
        %v1420 = vunpack.c.l.b16 %v628
        %v1421 = vunpack.c.h.b16 %v628
        %v1422 = vunpack.c.l.b16 %v629
        %v1423 = vunpack.c.h.b16 %v629
        %v1424 = vunpack.c.l.b16 %v630
        %v1425 = vunpack.c.h.b16 %v630
        %v1426 = vunpack.c.l.b16 %v631
        %v1427 = vunpack.c.h.b16 %v631
        %v1428 = vunpack.c.l.b16 %v632
        %v1429 = vunpack.c.h.b16 %v632
        %v1430 = vunpack.c.l.b16 %v633
        %v1431 = vunpack.c.h.b16 %v633
        %v1432 = vunpack.c.l.b16 %v634
        %v1433 = vunpack.c.h.b16 %v634
        %v1434 = vunpack.c.l.b16 %v635
        %v1435 = vunpack.c.h.b16 %v635
        %v1436 = vunpack.c.l.b16 %v636
        %v1437 = vunpack.c.h.b16 %v636
        %v1438 = vunpack.c.l.b16 %v637
        %v1439 = vunpack.c.h.b16 %v637
        %v1440 = vunpack.c.l.b16 %v638
        %v1441 = vunpack.c.h.b16 %v638
        %v1442 = vunpack.c.l.b16 %v639
        %v1443 = vunpack.c.h.b16 %v639
        %v1444 = vunpack.c.l.b16 %v640
        %v1445 = vunpack.c.h.b16 %v640
        %v1446 = vunpack.c.l.b16 %v641
        %v1447 = vunpack.c.h.b16 %v641
        %v1448 = vunpack.c.l.b16 %v642
        %v1449 = vunpack.c.h.b16 %v642
        %v1450 = vunpack.c.l.b16 %v643
        %v1451 = vunpack.c.h.b16 %v643
        %v1452 = vunpack.c.l.b16 %v644
        %v1453 = vunpack.c.h.b16 %v644
        %v1454 = vunpack.c.l.b16 %v645
        %v1455 = vunpack.c.h.b16 %v645
        %v1456 = vunpack.c.l.b16 %v646
        %v1457 = vunpack.c.h.b16 %v646
        %v1458 = vunpack.c.l.b16 %v647
        %v1459 = vunpack.c.h.b16 %v647
        %v1460 = vunpack.c.l.b16 %v648
        %v1461 = vunpack.c.h.b16 %v648
        %v1462 = vunpack.c.l.b16 %v649
        %v1463 = vunpack.c.h.b16 %v649
        %v1464 = vunpack.c.l.b16 %v650
        %v1465 = vunpack.c.h.b16 %v650
        %v1466 = vunpack.c.l.b16 %v651
        %v1467 = vunpack.c.h.b16 %v651
        %v1468 = vunpack.c.l.b16 %v652
        %v1469 = vunpack.c.h.b16 %v652
        %v1470 = vunpack.c.l.b16 %v653
        %v1471 = vunpack.c.h.b16 %v653
        %v1472 = vunpack.c.l.b16 %v654
        %v1473 = vunpack.c.h.b16 %v654
        %v1474 = vunpack.c.l.b16 %v655
        %v1475 = vunpack.c.h.b16 %v655
        %v1476 = vunpack.c.l.b16 %v656
        %v1477 = vunpack.c.h.b16 %v656
        %v1478 = vunpack.c.l.b16 %v657
        %v1479 = vunpack.c.h.b16 %v657
        %v1480 = vunpack.c.l.b16 %v658
        %v1481 = vunpack.c.h.b16 %v658
        %v1482 = vunpack.c.l.b16 %v659
        %v1483 = vunpack.c.h.b16 %v659
        %v1484 = vunpack.c.l.b16 %v660
        %v1485 = vunpack.c.h.b16 %v660
        %v1486 = vunpack.c.l.b16 %v661
        %v1487 = vunpack.c.h.b16 %v661
        %v1488 = vunpack.c.l.b16 %v662
        %v1489 = vunpack.c.h.b16 %v662
        %v1490 = vunpack.c.l.b16 %v663
        %v1491 = vunpack.c.h.b16 %v663
        %v1492 = vunpack.c.l.b16 %v664
        %v1493 = vunpack.c.h.b16 %v664
        %v1494 = vunpack.c.l.b16 %v665
        %v1495 = vunpack.c.h.b16 %v665
        %v1496 = vunpack.c.l.b16 %v666
        %v1497 = vunpack.c.h.b16 %v666
        %v1498 = vunpack.c.l.b16 %v667
        %v1499 = vunpack.c.h.b16 %v667
        %v1500 = vunpack.c.l.b16 %v668
        %v1501 = vunpack.c.h.b16 %v668
        %v1502 = vunpack.c.l.b16 %v669
        %v1503 = vunpack.c.h.b16 %v669
        %v1504 = vunpack.c.l.b16 %v670
        %v1505 = vunpack.c.h.b16 %v670
        %v1506 = vunpack.c.l.b16 %v671
        %v1507 = vunpack.c.h.b16 %v671
        %v1508 = vpack.c.b16 %v998, %v996
        %v1509 = vpack.c.b16 %v999, %v997
        %v1510 = vpack.c.b16 %v1002, %v1000
        %v1511 = vpack.c.b16 %v1003, %v1001
        %v1512 = vpack.c.b16 %v1006, %v1004
        %v1513 = vpack.c.b16 %v1007, %v1005
        %v1514 = vpack.c.b16 %v1010, %v1008
        %v1515 = vpack.c.b16 %v1011, %v1009
        %v1516 = vpack.c.b16 %v1014, %v1012
        %v1517 = vpack.c.b16 %v1015, %v1013
        %v1518 = vpack.c.b16 %v1018, %v1016
        %v1519 = vpack.c.b16 %v1019, %v1017
        %v1520 = vpack.c.b16 %v1022, %v1020
        %v1521 = vpack.c.b16 %v1023, %v1021
        %v1522 = vpack.c.b16 %v1026, %v1024
        %v1523 = vpack.c.b16 %v1027, %v1025
        %v1524 = vpack.c.b16 %v1030, %v1028
        %v1525 = vpack.c.b16 %v1031, %v1029
        %v1526 = vpack.c.b16 %v1034, %v1032
        %v1527 = vpack.c.b16 %v1035, %v1033
        %v1528 = vpack.c.b16 %v1038, %v1036
        %v1529 = vpack.c.b16 %v1039, %v1037
        %v1530 = vpack.c.b16 %v1042, %v1040
        %v1531 = vpack.c.b16 %v1043, %v1041
        %v1532 = vpack.c.b16 %v1046, %v1044
        %v1533 = vpack.c.b16 %v1047, %v1045
        %v1534 = vpack.c.b16 %v1050, %v1048
        %v1535 = vpack.c.b16 %v1051, %v1049
        %v1536 = vpack.c.b16 %v1054, %v1052
        %v1537 = vpack.c.b16 %v1055, %v1053
        %v1538 = vpack.c.b16 %v1058, %v1056
        %v1539 = vpack.c.b16 %v1059, %v1057
        %v1540 = vpack.c.b16 %v1062, %v1060
        %v1541 = vpack.c.b16 %v1063, %v1061
        %v1542 = vpack.c.b16 %v1066, %v1064
        %v1543 = vpack.c.b16 %v1067, %v1065
        %v1544 = vpack.c.b16 %v1070, %v1068
        %v1545 = vpack.c.b16 %v1071, %v1069
        %v1546 = vpack.c.b16 %v1074, %v1072
        %v1547 = vpack.c.b16 %v1075, %v1073
        %v1548 = vpack.c.b16 %v1078, %v1076
        %v1549 = vpack.c.b16 %v1079, %v1077
        %v1550 = vpack.c.b16 %v1082, %v1080
        %v1551 = vpack.c.b16 %v1083, %v1081
        %v1552 = vpack.c.b16 %v1086, %v1084
        %v1553 = vpack.c.b16 %v1087, %v1085
        %v1554 = vpack.c.b16 %v1090, %v1088
        %v1555 = vpack.c.b16 %v1091, %v1089
        %v1556 = vpack.c.b16 %v1094, %v1092
        %v1557 = vpack.c.b16 %v1095, %v1093
        %v1558 = vpack.c.b16 %v1098, %v1096
        %v1559 = vpack.c.b16 %v1099, %v1097
        %v1560 = vpack.c.b16 %v1102, %v1100
        %v1561 = vpack.c.b16 %v1103, %v1101
        %v1562 = vpack.c.b16 %v1106, %v1104
        %v1563 = vpack.c.b16 %v1107, %v1105
        %v1564 = vpack.c.b16 %v1110, %v1108
        %v1565 = vpack.c.b16 %v1111, %v1109
        %v1566 = vpack.c.b16 %v1114, %v1112
        %v1567 = vpack.c.b16 %v1115, %v1113
        %v1568 = vpack.c.b16 %v1118, %v1116
        %v1569 = vpack.c.b16 %v1119, %v1117
        %v1570 = vpack.c.b16 %v1122, %v1120
        %v1571 = vpack.c.b16 %v1123, %v1121
        %v1572 = vpack.c.b16 %v1126, %v1124
        %v1573 = vpack.c.b16 %v1127, %v1125
        %v1574 = vpack.c.b16 %v1130, %v1128
        %v1575 = vpack.c.b16 %v1131, %v1129
        %v1576 = vpack.c.b16 %v1134, %v1132
        %v1577 = vpack.c.b16 %v1135, %v1133
        %v1578 = vpack.c.b16 %v1138, %v1136
        %v1579 = vpack.c.b16 %v1139, %v1137
        %v1580 = vpack.c.b16 %v1142, %v1140
        %v1581 = vpack.c.b16 %v1143, %v1141
        %v1582 = vpack.c.b16 %v1146, %v1144
        %v1583 = vpack.c.b16 %v1147, %v1145
        %v1584 = vpack.c.b16 %v1150, %v1148
        %v1585 = vpack.c.b16 %v1151, %v1149
        %v1586 = vpack.c.b16 %v1154, %v1152
        %v1587 = vpack.c.b16 %v1155, %v1153
        %v1588 = vpack.c.b16 %v1158, %v1156
        %v1589 = vpack.c.b16 %v1159, %v1157
        %v1590 = vpack.c.b16 %v1162, %v1160
        %v1591 = vpack.c.b16 %v1163, %v1161
        %v1592 = vpack.c.b16 %v1166, %v1164
        %v1593 = vpack.c.b16 %v1167, %v1165
        %v1594 = vpack.c.b16 %v1170, %v1168
        %v1595 = vpack.c.b16 %v1171, %v1169
        %v1596 = vpack.c.b16 %v1174, %v1172
        %v1597 = vpack.c.b16 %v1175, %v1173
        %v1598 = vpack.c.b16 %v1178, %v1176
        %v1599 = vpack.c.b16 %v1179, %v1177
        %v1600 = vpack.c.b16 %v1182, %v1180
        %v1601 = vpack.c.b16 %v1183, %v1181
        %v1602 = vpack.c.b16 %v1186, %v1184
        %v1603 = vpack.c.b16 %v1187, %v1185
        %v1604 = vpack.c.b16 %v1190, %v1188
        %v1605 = vpack.c.b16 %v1191, %v1189
        %v1606 = vpack.c.b16 %v1194, %v1192
        %v1607 = vpack.c.b16 %v1195, %v1193
        %v1608 = vpack.c.b16 %v1198, %v1196
        %v1609 = vpack.c.b16 %v1199, %v1197
        %v1610 = vpack.c.b16 %v1202, %v1200
        %v1611 = vpack.c.b16 %v1203, %v1201
        %v1612 = vpack.c.b16 %v1206, %v1204
        %v1613 = vpack.c.b16 %v1207, %v1205
        %v1614 = vpack.c.b16 %v1210, %v1208
        %v1615 = vpack.c.b16 %v1211, %v1209
        %v1616 = vpack.c.b16 %v1214, %v1212
        %v1617 = vpack.c.b16 %v1215, %v1213
        %v1618 = vpack.c.b16 %v1218, %v1216
        %v1619 = vpack.c.b16 %v1219, %v1217
        %v1620 = vpack.c.b16 %v1222, %v1220
        %v1621 = vpack.c.b16 %v1223, %v1221
        %v1622 = vpack.c.b16 %v1226, %v1224
        %v1623 = vpack.c.b16 %v1227, %v1225
        %v1624 = vpack.c.b16 %v1230, %v1228
        %v1625 = vpack.c.b16 %v1231, %v1229
        %v1626 = vpack.c.b16 %v1234, %v1232
        %v1627 = vpack.c.b16 %v1235, %v1233
        %v1628 = vpack.c.b16 %v1238, %v1236
        %v1629 = vpack.c.b16 %v1239, %v1237
        %v1630 = vpack.c.b16 %v1242, %v1240
        %v1631 = vpack.c.b16 %v1243, %v1241
        %v1632 = vpack.c.b16 %v1246, %v1244
        %v1633 = vpack.c.b16 %v1247, %v1245
        %v1634 = vpack.c.b16 %v1250, %v1248
        %v1635 = vpack.c.b16 %v1251, %v1249
        %v1636 = vpack.c.b16 %v1254, %v1252
        %v1637 = vpack.c.b16 %v1255, %v1253
        %v1638 = vpack.c.b16 %v1258, %v1256
        %v1639 = vpack.c.b16 %v1259, %v1257
        %v1640 = vpack.c.b16 %v1262, %v1260
        %v1641 = vpack.c.b16 %v1263, %v1261
        %v1642 = vpack.c.b16 %v1266, %v1264
        %v1643 = vpack.c.b16 %v1267, %v1265
        %v1644 = vpack.c.b16 %v1270, %v1268
        %v1645 = vpack.c.b16 %v1271, %v1269
        %v1646 = vpack.c.b16 %v1274, %v1272
        %v1647 = vpack.c.b16 %v1275, %v1273
        %v1648 = vpack.c.b16 %v1278, %v1276
        %v1649 = vpack.c.b16 %v1279, %v1277
        %v1650 = vpack.c.b16 %v1282, %v1280
        %v1651 = vpack.c.b16 %v1283, %v1281
        %v1652 = vpack.c.b16 %v1286, %v1284
        %v1653 = vpack.c.b16 %v1287, %v1285
        %v1654 = vpack.c.b16 %v1290, %v1288
        %v1655 = vpack.c.b16 %v1291, %v1289
        %v1656 = vpack.c.b16 %v1294, %v1292
        %v1657 = vpack.c.b16 %v1295, %v1293
        %v1658 = vpack.c.b16 %v1298, %v1296
        %v1659 = vpack.c.b16 %v1299, %v1297
        %v1660 = vpack.c.b16 %v1302, %v1300
        %v1661 = vpack.c.b16 %v1303, %v1301
        %v1662 = vpack.c.b16 %v1306, %v1304
        %v1663 = vpack.c.b16 %v1307, %v1305
        %v1664 = vpack.c.b16 %v1310, %v1308
        %v1665 = vpack.c.b16 %v1311, %v1309
        %v1666 = vpack.c.b16 %v1314, %v1312
        %v1667 = vpack.c.b16 %v1315, %v1313
        %v1668 = vpack.c.b16 %v1318, %v1316
        %v1669 = vpack.c.b16 %v1319, %v1317
        %v1670 = vpack.c.b16 %v1322, %v1320
        %v1671 = vpack.c.b16 %v1323, %v1321
        %v1672 = vpack.c.b16 %v1326, %v1324
        %v1673 = vpack.c.b16 %v1327, %v1325
        %v1674 = vpack.c.b16 %v1330, %v1328
        %v1675 = vpack.c.b16 %v1331, %v1329
        %v1676 = vpack.c.b16 %v1334, %v1332
        %v1677 = vpack.c.b16 %v1335, %v1333
        %v1678 = vpack.c.b16 %v1338, %v1336
        %v1679 = vpack.c.b16 %v1339, %v1337
        %v1680 = vpack.c.b16 %v1342, %v1340
        %v1681 = vpack.c.b16 %v1343, %v1341
        %v1682 = vpack.c.b16 %v1346, %v1344
        %v1683 = vpack.c.b16 %v1347, %v1345
        %v1684 = vpack.c.b16 %v1350, %v1348
        %v1685 = vpack.c.b16 %v1351, %v1349
        %v1686 = vpack.c.b16 %v1354, %v1352
        %v1687 = vpack.c.b16 %v1355, %v1353
        %v1688 = vpack.c.b16 %v1358, %v1356
        %v1689 = vpack.c.b16 %v1359, %v1357
        %v1690 = vpack.c.b16 %v1362, %v1360
        %v1691 = vpack.c.b16 %v1363, %v1361
        %v1692 = vpack.c.b16 %v1366, %v1364
        %v1693 = vpack.c.b16 %v1367, %v1365
        %v1694 = vpack.c.b16 %v1370, %v1368
        %v1695 = vpack.c.b16 %v1371, %v1369
        %v1696 = vpack.c.b16 %v1374, %v1372
        %v1697 = vpack.c.b16 %v1375, %v1373
        %v1698 = vpack.c.b16 %v1378, %v1376
        %v1699 = vpack.c.b16 %v1379, %v1377
        %v1700 = vpack.c.b16 %v1382, %v1380
        %v1701 = vpack.c.b16 %v1383, %v1381
        %v1702 = vpack.c.b16 %v1386, %v1384
        %v1703 = vpack.c.b16 %v1387, %v1385
        %v1704 = vpack.c.b16 %v1390, %v1388
        %v1705 = vpack.c.b16 %v1391, %v1389
        %v1706 = vpack.c.b16 %v1394, %v1392
        %v1707 = vpack.c.b16 %v1395, %v1393
        %v1708 = vpack.c.b16 %v1398, %v1396
        %v1709 = vpack.c.b16 %v1399, %v1397
        %v1710 = vpack.c.b16 %v1402, %v1400
        %v1711 = vpack.c.b16 %v1403, %v1401
        %v1712 = vpack.c.b16 %v1406, %v1404
        %v1713 = vpack.c.b16 %v1407, %v1405
        %v1714 = vpack.c.b16 %v1410, %v1408
        %v1715 = vpack.c.b16 %v1411, %v1409
        %v1716 = vpack.c.b16 %v1414, %v1412
        %v1717 = vpack.c.b16 %v1415, %v1413
        %v1718 = vpack.c.b16 %v1418, %v1416
        %v1719 = vpack.c.b16 %v1419, %v1417
        %v1720 = vpack.c.b16 %v1422, %v1420
        %v1721 = vpack.c.b16 %v1423, %v1421
        %v1722 = vpack.c.b16 %v1426, %v1424
        %v1723 = vpack.c.b16 %v1427, %v1425
        %v1724 = vpack.c.b16 %v1430, %v1428
        %v1725 = vpack.c.b16 %v1431, %v1429
        %v1726 = vpack.c.b16 %v1434, %v1432
        %v1727 = vpack.c.b16 %v1435, %v1433
        %v1728 = vpack.c.b16 %v1438, %v1436
        %v1729 = vpack.c.b16 %v1439, %v1437
        %v1730 = vpack.c.b16 %v1442, %v1440
        %v1731 = vpack.c.b16 %v1443, %v1441
        %v1732 = vpack.c.b16 %v1446, %v1444
        %v1733 = vpack.c.b16 %v1447, %v1445
        %v1734 = vpack.c.b16 %v1450, %v1448
        %v1735 = vpack.c.b16 %v1451, %v1449
        %v1736 = vpack.c.b16 %v1454, %v1452
        %v1737 = vpack.c.b16 %v1455, %v1453
        %v1738 = vpack.c.b16 %v1458, %v1456
        %v1739 = vpack.c.b16 %v1459, %v1457
        %v1740 = vpack.c.b16 %v1462, %v1460
        %v1741 = vpack.c.b16 %v1463, %v1461
        %v1742 = vpack.c.b16 %v1466, %v1464
        %v1743 = vpack.c.b16 %v1467, %v1465
        %v1744 = vpack.c.b16 %v1470, %v1468
        %v1745 = vpack.c.b16 %v1471, %v1469
        %v1746 = vpack.c.b16 %v1474, %v1472
        %v1747 = vpack.c.b16 %v1475, %v1473
        %v1748 = vpack.c.b16 %v1478, %v1476
        %v1749 = vpack.c.b16 %v1479, %v1477
        %v1750 = vpack.c.b16 %v1482, %v1480
        %v1751 = vpack.c.b16 %v1483, %v1481
        %v1752 = vpack.c.b16 %v1486, %v1484
        %v1753 = vpack.c.b16 %v1487, %v1485
        %v1754 = vpack.c.b16 %v1490, %v1488
        %v1755 = vpack.c.b16 %v1491, %v1489
        %v1756 = vpack.c.b16 %v1494, %v1492
        %v1757 = vpack.c.b16 %v1495, %v1493
        %v1758 = vpack.c.b16 %v1498, %v1496
        %v1759 = vpack.c.b16 %v1499, %v1497
        %v1760 = vpack.c.b16 %v1502, %v1500
        %v1761 = vpack.c.b16 %v1503, %v1501
        %v1762 = vpack.c.b16 %v1506, %v1504
        %v1763 = vpack.c.b16 %v1507, %v1505
        %2020 = vmatprep.subr.bf16.mxu0 %v1523
        %2021 = vmatpush1.bf16.msra.mxu0 %v1522
        %2022 = vmatprep.subr.bf16.mxu0 %v1521
        %2023 = vmatpush1.bf16.msra.mxu0 %v1520
        %2024 = vmatprep.subr.bf16.mxu0 %v1519
        %2025 = vmatpush1.bf16.msra.mxu0 %v1518
        %2026 = vmatprep.subr.bf16.mxu0 %v1517
        %2027 = vmatpush1.bf16.msra.mxu0 %v1516
        %2028 = vmatprep.subr.bf16.mxu0 %v1515
        %2029 = vmatpush1.bf16.msra.mxu0 %v1514
        %2030 = vmatprep.subr.bf16.mxu0 %v1513
        %2031 = vmatpush1.bf16.msra.mxu0 %v1512
        %2032 = vmatprep.subr.bf16.mxu0 %v1511
        %2033 = vmatpush1.bf16.msra.mxu0 %v1510
        %2034 = vmatprep.subr.bf16.mxu0 %v1509
        %2035 = vmatpush1.bf16.msra.mxu0 %v1508
        %2036 = vmatprep.subr.bf16.mxu0 %v1539
        %2037 = vmatpush2.bf16.msra.mxu0 %v1538
        %2038 = vmatprep.subr.bf16.mxu0 %v1537
        %2039 = vmatpush2.bf16.msra.mxu0 %v1536
        %2040 = vmatprep.subr.bf16.mxu0 %v1535
        %2041 = vmatpush2.bf16.msra.mxu0 %v1534
        %2042 = vmatprep.subr.bf16.mxu0 %v1533
        %2043 = vmatpush2.bf16.msra.mxu0 %v1532
        %2044 = vmatprep.subr.bf16.mxu0 %v1531
        %2045 = vmatpush2.bf16.msra.mxu0 %v1530
        %2046 = vmatprep.subr.bf16.mxu0 %v1529
        %2047 = vmatpush2.bf16.msra.mxu0 %v1528
        %2048 = vmatprep.subr.bf16.mxu0 %v1527
        %2049 = vmatpush2.bf16.msra.mxu0 %v1526
        %2050 = vmatprep.subr.bf16.mxu0 %v1525
        %2051 = vmatpush2.bf16.msra.mxu0 %v1524
        %2052 = vmatprep.mubr.bf16.mxu0 %v709
        %2053 = vmatmul.mubr.bf16.gmra.mxu0 %v708
        %v2054 = vpop.f32.mrf.mxu0
        %v2055 = vadd.f32 %v677, %v2054
        %v2056 = vpop.f32.mrf.mxu0
        %v2057 = vadd.f32 %v681, %v2056
        %v2058 = vpop.f32.mrf.mxu0
        %v2059 = vpop.f32.mrf.mxu0
        %2060 = vdwg.mxu0
        %2061 = vmatprep.subr.bf16.mxu0 %v1555
        %2062 = vmatpush1.bf16.msra.mxu0 %v1554
        %2063 = vmatprep.subr.bf16.mxu0 %v1553
        %2064 = vmatpush1.bf16.msra.mxu0 %v1552
        %2065 = vmatprep.subr.bf16.mxu0 %v1551
        %2066 = vmatpush1.bf16.msra.mxu0 %v1550
        %2067 = vmatprep.subr.bf16.mxu0 %v1549
        %2068 = vmatpush1.bf16.msra.mxu0 %v1548
        %2069 = vmatprep.subr.bf16.mxu0 %v1547
        %2070 = vmatpush1.bf16.msra.mxu0 %v1546
        %2071 = vmatprep.subr.bf16.mxu0 %v1545
        %2072 = vmatpush1.bf16.msra.mxu0 %v1544
        %2073 = vmatprep.subr.bf16.mxu0 %v1543
        %2074 = vmatpush1.bf16.msra.mxu0 %v1542
        %2075 = vmatprep.subr.bf16.mxu0 %v1541
        %2076 = vmatpush1.bf16.msra.mxu0 %v1540
        %2077 = vmatprep.subr.bf16.mxu0 %v1571
        %2078 = vmatpush2.bf16.msra.mxu0 %v1570
        %2079 = vmatprep.subr.bf16.mxu0 %v1569
        %2080 = vmatpush2.bf16.msra.mxu0 %v1568
        %2081 = vmatprep.subr.bf16.mxu0 %v1567
        %2082 = vmatpush2.bf16.msra.mxu0 %v1566
        %2083 = vmatprep.subr.bf16.mxu0 %v1565
        %2084 = vmatpush2.bf16.msra.mxu0 %v1564
        %2085 = vmatprep.subr.bf16.mxu0 %v1563
        %2086 = vmatpush2.bf16.msra.mxu0 %v1562
        %2087 = vmatprep.subr.bf16.mxu0 %v1561
        %2088 = vmatpush2.bf16.msra.mxu0 %v1560
        %2089 = vmatprep.subr.bf16.mxu0 %v1559
        %2090 = vmatpush2.bf16.msra.mxu0 %v1558
        %2091 = vmatprep.subr.bf16.mxu0 %v1557
        %2092 = vmatpush2.bf16.msra.mxu0 %v1556
        %2093 = vmatprep.mubr.bf16.mxu0 %v711
        %2094 = vmatmul.mubr.bf16.gmra.mxu0 %v710
        %v2095 = vpop.f32.mrf.mxu0
        %v2096 = vadd.f32 %v2055, %v2095
        %v2097 = vpop.f32.mrf.mxu0
        %v2098 = vadd.f32 %v2057, %v2097
        %v2099 = vpop.f32.mrf.mxu0
        %v2100 = vpop.f32.mrf.mxu0
        %2101 = vdwg.mxu0
        %2102 = vmatprep.subr.bf16.mxu0 %v1587
        %2103 = vmatpush1.bf16.msra.mxu0 %v1586
        %2104 = vmatprep.subr.bf16.mxu0 %v1585
        %2105 = vmatpush1.bf16.msra.mxu0 %v1584
        %2106 = vmatprep.subr.bf16.mxu0 %v1583
        %2107 = vmatpush1.bf16.msra.mxu0 %v1582
        %2108 = vmatprep.subr.bf16.mxu0 %v1581
        %2109 = vmatpush1.bf16.msra.mxu0 %v1580
        %2110 = vmatprep.subr.bf16.mxu0 %v1579
        %2111 = vmatpush1.bf16.msra.mxu0 %v1578
        %2112 = vmatprep.subr.bf16.mxu0 %v1577
        %2113 = vmatpush1.bf16.msra.mxu0 %v1576
        %2114 = vmatprep.subr.bf16.mxu0 %v1575
        %2115 = vmatpush1.bf16.msra.mxu0 %v1574
        %2116 = vmatprep.subr.bf16.mxu0 %v1573
        %2117 = vmatpush1.bf16.msra.mxu0 %v1572
        %2118 = vmatprep.subr.bf16.mxu0 %v1603
        %2119 = vmatpush2.bf16.msra.mxu0 %v1602
        %2120 = vmatprep.subr.bf16.mxu0 %v1601
        %2121 = vmatpush2.bf16.msra.mxu0 %v1600
        %2122 = vmatprep.subr.bf16.mxu0 %v1599
        %2123 = vmatpush2.bf16.msra.mxu0 %v1598
        %2124 = vmatprep.subr.bf16.mxu0 %v1597
        %2125 = vmatpush2.bf16.msra.mxu0 %v1596
        %2126 = vmatprep.subr.bf16.mxu0 %v1595
        %2127 = vmatpush2.bf16.msra.mxu0 %v1594
        %2128 = vmatprep.subr.bf16.mxu0 %v1593
        %2129 = vmatpush2.bf16.msra.mxu0 %v1592
        %2130 = vmatprep.subr.bf16.mxu0 %v1591
        %2131 = vmatpush2.bf16.msra.mxu0 %v1590
        %2132 = vmatprep.subr.bf16.mxu0 %v1589
        %2133 = vmatpush2.bf16.msra.mxu0 %v1588
        %2134 = vmatprep.mubr.bf16.mxu0 %v713
        %2135 = vmatmul.mubr.bf16.gmra.mxu0 %v712
        %v2136 = vpop.f32.mrf.mxu0
        %v2137 = vadd.f32 %v2096, %v2136
        %v2138 = vpop.f32.mrf.mxu0
        %v2139 = vadd.f32 %v2098, %v2138
        %v2140 = vpop.f32.mrf.mxu0
        %v2141 = vpop.f32.mrf.mxu0
        %2142 = vdwg.mxu0
        %2143 = vmatprep.subr.bf16.mxu0 %v1619
        %2144 = vmatpush1.bf16.msra.mxu0 %v1618
        %2145 = vmatprep.subr.bf16.mxu0 %v1617
        %2146 = vmatpush1.bf16.msra.mxu0 %v1616
        %2147 = vmatprep.subr.bf16.mxu0 %v1615
        %2148 = vmatpush1.bf16.msra.mxu0 %v1614
        %2149 = vmatprep.subr.bf16.mxu0 %v1613
        %2150 = vmatpush1.bf16.msra.mxu0 %v1612
        %2151 = vmatprep.subr.bf16.mxu0 %v1611
        %2152 = vmatpush1.bf16.msra.mxu0 %v1610
        %2153 = vmatprep.subr.bf16.mxu0 %v1609
        %2154 = vmatpush1.bf16.msra.mxu0 %v1608
        %2155 = vmatprep.subr.bf16.mxu0 %v1607
        %2156 = vmatpush1.bf16.msra.mxu0 %v1606
        %2157 = vmatprep.subr.bf16.mxu0 %v1605
        %2158 = vmatpush1.bf16.msra.mxu0 %v1604
        %2159 = vmatprep.subr.bf16.mxu0 %v1635
        %2160 = vmatpush2.bf16.msra.mxu0 %v1634
        %2161 = vmatprep.subr.bf16.mxu0 %v1633
        %2162 = vmatpush2.bf16.msra.mxu0 %v1632
        %2163 = vmatprep.subr.bf16.mxu0 %v1631
        %2164 = vmatpush2.bf16.msra.mxu0 %v1630
        %2165 = vmatprep.subr.bf16.mxu0 %v1629
        %2166 = vmatpush2.bf16.msra.mxu0 %v1628
        %2167 = vmatprep.subr.bf16.mxu0 %v1627
        %2168 = vmatpush2.bf16.msra.mxu0 %v1626
        %2169 = vmatprep.subr.bf16.mxu0 %v1625
        %2170 = vmatpush2.bf16.msra.mxu0 %v1624
        %2171 = vmatprep.subr.bf16.mxu0 %v1623
        %2172 = vmatpush2.bf16.msra.mxu0 %v1622
        %2173 = vmatprep.subr.bf16.mxu0 %v1621
        %2174 = vmatpush2.bf16.msra.mxu0 %v1620
        %2175 = vmatprep.mubr.bf16.mxu0 %v715
        %2176 = vmatmul.mubr.bf16.gmra.mxu0 %v714
        %v2177 = vpop.f32.mrf.mxu0
        %v2178 = vadd.f32 %v2137, %v2177
        %v2179 = vpop.f32.mrf.mxu0
        %v2180 = vadd.f32 %v2139, %v2179
        %v2181 = vpop.f32.mrf.mxu0
        %v2182 = vpop.f32.mrf.mxu0
        %2183 = vdwg.mxu0
        %2184 = vmatprep.subr.bf16.mxu0 %v1651
        %2185 = vmatpush1.bf16.msra.mxu0 %v1650
        %2186 = vmatprep.subr.bf16.mxu0 %v1649
        %2187 = vmatpush1.bf16.msra.mxu0 %v1648
        %2188 = vmatprep.subr.bf16.mxu0 %v1647
        %2189 = vmatpush1.bf16.msra.mxu0 %v1646
        %2190 = vmatprep.subr.bf16.mxu0 %v1645
        %2191 = vmatpush1.bf16.msra.mxu0 %v1644
        %2192 = vmatprep.subr.bf16.mxu0 %v1643
        %2193 = vmatpush1.bf16.msra.mxu0 %v1642
        %2194 = vmatprep.subr.bf16.mxu0 %v1641
        %2195 = vmatpush1.bf16.msra.mxu0 %v1640
        %2196 = vmatprep.subr.bf16.mxu0 %v1639
        %2197 = vmatpush1.bf16.msra.mxu0 %v1638
        %2198 = vmatprep.subr.bf16.mxu0 %v1637
        %2199 = vmatpush1.bf16.msra.mxu0 %v1636
        %2200 = vmatprep.subr.bf16.mxu0 %v1667
        %2201 = vmatpush2.bf16.msra.mxu0 %v1666
        %2202 = vmatprep.subr.bf16.mxu0 %v1665
        %2203 = vmatpush2.bf16.msra.mxu0 %v1664
        %2204 = vmatprep.subr.bf16.mxu0 %v1663
        %2205 = vmatpush2.bf16.msra.mxu0 %v1662
        %2206 = vmatprep.subr.bf16.mxu0 %v1661
        %2207 = vmatpush2.bf16.msra.mxu0 %v1660
        %2208 = vmatprep.subr.bf16.mxu0 %v1659
        %2209 = vmatpush2.bf16.msra.mxu0 %v1658
        %2210 = vmatprep.subr.bf16.mxu0 %v1657
        %2211 = vmatpush2.bf16.msra.mxu0 %v1656
        %2212 = vmatprep.subr.bf16.mxu0 %v1655
        %2213 = vmatpush2.bf16.msra.mxu0 %v1654
        %2214 = vmatprep.subr.bf16.mxu0 %v1653
        %2215 = vmatpush2.bf16.msra.mxu0 %v1652
        %2216 = vmatprep.mubr.bf16.mxu0 %v717
        %2217 = vmatmul.mubr.bf16.gmra.mxu0 %v716
        %v2218 = vpop.f32.mrf.mxu0
        %v2219 = vadd.f32 %v2178, %v2218
        %v2220 = vpop.f32.mrf.mxu0
        %v2221 = vadd.f32 %v2180, %v2220
        %v2222 = vpop.f32.mrf.mxu0
        %v2223 = vpop.f32.mrf.mxu0
        %2224 = vdwg.mxu0
        %2225 = vmatprep.subr.bf16.mxu0 %v1683
        %2226 = vmatpush1.bf16.msra.mxu0 %v1682
        %2227 = vmatprep.subr.bf16.mxu0 %v1681
        %2228 = vmatpush1.bf16.msra.mxu0 %v1680
        %2229 = vmatprep.subr.bf16.mxu0 %v1679
        %2230 = vmatpush1.bf16.msra.mxu0 %v1678
        %2231 = vmatprep.subr.bf16.mxu0 %v1677
        %2232 = vmatpush1.bf16.msra.mxu0 %v1676
        %2233 = vmatprep.subr.bf16.mxu0 %v1675
        %2234 = vmatpush1.bf16.msra.mxu0 %v1674
        %2235 = vmatprep.subr.bf16.mxu0 %v1673
        %2236 = vmatpush1.bf16.msra.mxu0 %v1672
        %2237 = vmatprep.subr.bf16.mxu0 %v1671
        %2238 = vmatpush1.bf16.msra.mxu0 %v1670
        %2239 = vmatprep.subr.bf16.mxu0 %v1669
        %2240 = vmatpush1.bf16.msra.mxu0 %v1668
        %2241 = vmatprep.subr.bf16.mxu0 %v1699
        %2242 = vmatpush2.bf16.msra.mxu0 %v1698
        %2243 = vmatprep.subr.bf16.mxu0 %v1697
        %2244 = vmatpush2.bf16.msra.mxu0 %v1696
        %2245 = vmatprep.subr.bf16.mxu0 %v1695
        %2246 = vmatpush2.bf16.msra.mxu0 %v1694
        %2247 = vmatprep.subr.bf16.mxu0 %v1693
        %2248 = vmatpush2.bf16.msra.mxu0 %v1692
        %2249 = vmatprep.subr.bf16.mxu0 %v1691
        %2250 = vmatpush2.bf16.msra.mxu0 %v1690
        %2251 = vmatprep.subr.bf16.mxu0 %v1689
        %2252 = vmatpush2.bf16.msra.mxu0 %v1688
        %2253 = vmatprep.subr.bf16.mxu0 %v1687
        %2254 = vmatpush2.bf16.msra.mxu0 %v1686
        %2255 = vmatprep.subr.bf16.mxu0 %v1685
        %2256 = vmatpush2.bf16.msra.mxu0 %v1684
        %2257 = vmatprep.mubr.bf16.mxu0 %v719
        %2258 = vmatmul.mubr.bf16.gmra.mxu0 %v718
        %v2259 = vpop.f32.mrf.mxu0
        %v2260 = vadd.f32 %v2219, %v2259
        %v2261 = vpop.f32.mrf.mxu0
        %v2262 = vadd.f32 %v2221, %v2261
        %v2263 = vpop.f32.mrf.mxu0
        %v2264 = vpop.f32.mrf.mxu0
        %2265 = vdwg.mxu0
        %2266 = vmatprep.subr.bf16.mxu0 %v1715
        %2267 = vmatpush1.bf16.msra.mxu0 %v1714
        %2268 = vmatprep.subr.bf16.mxu0 %v1713
        %2269 = vmatpush1.bf16.msra.mxu0 %v1712
        %2270 = vmatprep.subr.bf16.mxu0 %v1711
        %2271 = vmatpush1.bf16.msra.mxu0 %v1710
        %2272 = vmatprep.subr.bf16.mxu0 %v1709
        %2273 = vmatpush1.bf16.msra.mxu0 %v1708
        %2274 = vmatprep.subr.bf16.mxu0 %v1707
        %2275 = vmatpush1.bf16.msra.mxu0 %v1706
        %2276 = vmatprep.subr.bf16.mxu0 %v1705
        %2277 = vmatpush1.bf16.msra.mxu0 %v1704
        %2278 = vmatprep.subr.bf16.mxu0 %v1703
        %2279 = vmatpush1.bf16.msra.mxu0 %v1702
        %2280 = vmatprep.subr.bf16.mxu0 %v1701
        %2281 = vmatpush1.bf16.msra.mxu0 %v1700
        %2282 = vmatprep.subr.bf16.mxu0 %v1731
        %2283 = vmatpush2.bf16.msra.mxu0 %v1730
        %2284 = vmatprep.subr.bf16.mxu0 %v1729
        %2285 = vmatpush2.bf16.msra.mxu0 %v1728
        %2286 = vmatprep.subr.bf16.mxu0 %v1727
        %2287 = vmatpush2.bf16.msra.mxu0 %v1726
        %2288 = vmatprep.subr.bf16.mxu0 %v1725
        %2289 = vmatpush2.bf16.msra.mxu0 %v1724
        %2290 = vmatprep.subr.bf16.mxu0 %v1723
        %2291 = vmatpush2.bf16.msra.mxu0 %v1722
        %2292 = vmatprep.subr.bf16.mxu0 %v1721
        %2293 = vmatpush2.bf16.msra.mxu0 %v1720
        %2294 = vmatprep.subr.bf16.mxu0 %v1719
        %2295 = vmatpush2.bf16.msra.mxu0 %v1718
        %2296 = vmatprep.subr.bf16.mxu0 %v1717
        %2297 = vmatpush2.bf16.msra.mxu0 %v1716
        %2298 = vmatprep.mubr.bf16.mxu0 %v721
        %2299 = vmatmul.mubr.bf16.gmra.mxu0 %v720
        %v2300 = vpop.f32.mrf.mxu0
        %v2301 = vadd.f32 %v2260, %v2300
        %v2302 = vpop.f32.mrf.mxu0
        %v2303 = vadd.f32 %v2262, %v2302
        %v2304 = vpop.f32.mrf.mxu0
        %v2305 = vpop.f32.mrf.mxu0
        %2306 = vdwg.mxu0
        %2307 = vmatprep.subr.bf16.mxu0 %v1747
        %2308 = vmatpush1.bf16.msra.mxu0 %v1746
        %2309 = vmatprep.subr.bf16.mxu0 %v1745
        %2310 = vmatpush1.bf16.msra.mxu0 %v1744
        %2311 = vmatprep.subr.bf16.mxu0 %v1743
        %2312 = vmatpush1.bf16.msra.mxu0 %v1742
        %2313 = vmatprep.subr.bf16.mxu0 %v1741
        %2314 = vmatpush1.bf16.msra.mxu0 %v1740
        %2315 = vmatprep.subr.bf16.mxu0 %v1739
        %2316 = vmatpush1.bf16.msra.mxu0 %v1738
        %2317 = vmatprep.subr.bf16.mxu0 %v1737
        %2318 = vmatpush1.bf16.msra.mxu0 %v1736
        %2319 = vmatprep.subr.bf16.mxu0 %v1735
        %2320 = vmatpush1.bf16.msra.mxu0 %v1734
        %2321 = vmatprep.subr.bf16.mxu0 %v1733
        %2322 = vmatpush1.bf16.msra.mxu0 %v1732
        %2323 = vmatprep.subr.bf16.mxu0 %v1763
        %2324 = vmatpush2.bf16.msra.mxu0 %v1762
        %2325 = vmatprep.subr.bf16.mxu0 %v1761
        %2326 = vmatpush2.bf16.msra.mxu0 %v1760
        %2327 = vmatprep.subr.bf16.mxu0 %v1759
        %2328 = vmatpush2.bf16.msra.mxu0 %v1758
        %2329 = vmatprep.subr.bf16.mxu0 %v1757
        %2330 = vmatpush2.bf16.msra.mxu0 %v1756
        %2331 = vmatprep.subr.bf16.mxu0 %v1755
        %2332 = vmatpush2.bf16.msra.mxu0 %v1754
        %2333 = vmatprep.subr.bf16.mxu0 %v1753
        %2334 = vmatpush2.bf16.msra.mxu0 %v1752
        %2335 = vmatprep.subr.bf16.mxu0 %v1751
        %2336 = vmatpush2.bf16.msra.mxu0 %v1750
        %2337 = vmatprep.subr.bf16.mxu0 %v1749
        %2338 = vmatpush2.bf16.msra.mxu0 %v1748
        %2339 = vmatprep.mubr.bf16.mxu0 %v723
        %2340 = vmatmul.mubr.bf16.gmra.mxu0 %v722
        %v2341 = vpop.f32.mrf.mxu0
        %v2342 = vadd.f32 %v2301, %v2341
        %v2343 = vpop.f32.mrf.mxu0
        %v2344 = vadd.f32 %v2303, %v2343
        %v2345 = vpop.f32.mrf.mxu0
        %v2346 = vpop.f32.mrf.mxu0
        %2347 = vdwg.mxu0
        %v2348 = vmax.f32 %v2342, 0.0
        %v2349 = vmax.f32 %v2344, 0.0
        %v2350 = vld [vmem:[#allocation2] sm:$0xff]
        %v2351 = vld [vmem:[#allocation2 + $0x8] sm:$0xff]
        %v2352 = vpack.c.bf16 %v2348, %v2348
        %v2353 = vpack.c.bf16 %v2349, %v2349
        %v2354 = vld [vmem:[%s333] sm:$0xff]
        %v2355 = vld [vmem:[%s333 + $0x8] sm:$0xff]
        %v2356 = vld [vmem:[%s333 + $0x10] sm:$0xff]
        %v2357 = vld [vmem:[%s333 + $0x18] sm:$0xff]
        %v2358 = vld [vmem:[%s333 + $0x20] sm:$0xff]
        %v2359 = vld [vmem:[%s333 + $0x28] sm:$0xff]
        %v2360 = vld [vmem:[%s333 + $0x30] sm:$0xff]
        %v2361 = vld [vmem:[%s333 + $0x38] sm:$0xff]
        %v2362 = vld [vmem:[%s333 + $0x40] sm:$0xff]
        %v2363 = vld [vmem:[%s333 + $0x48] sm:$0xff]
        %v2364 = vld [vmem:[%s333 + $0x50] sm:$0xff]
        %v2365 = vld [vmem:[%s333 + $0x58] sm:$0xff]
        %v2366 = vld [vmem:[%s333 + $0x60] sm:$0xff]
        %v2367 = vld [vmem:[%s333 + $0x68] sm:$0xff]
        %v2368 = vld [vmem:[%s333 + $0x70] sm:$0xff]
        %v2369 = vld [vmem:[%s333 + $0x78] sm:$0xff]
        %v2370 = vld [vmem:[%s333 + $0x80] sm:$0xff]
        %v2371 = vld [vmem:[%s333 + $0x88] sm:$0xff]
        %v2372 = vld [vmem:[%s333 + $0x90] sm:$0xff]
        %v2373 = vld [vmem:[%s333 + $0x98] sm:$0xff]
        %v2374 = vld [vmem:[%s333 + $0xa0] sm:$0xff]
        %v2375 = vld [vmem:[%s333 + $0xa8] sm:$0xff]
        %v2376 = vld [vmem:[%s333 + $0xb0] sm:$0xff]
        %v2377 = vld [vmem:[%s333 + $0xb8] sm:$0xff]
        %v2378 = vld [vmem:[%s333 + $0xc0] sm:$0xff]
        %v2379 = vld [vmem:[%s333 + $0xc8] sm:$0xff]
        %v2380 = vld [vmem:[%s333 + $0xd0] sm:$0xff]
        %v2381 = vld [vmem:[%s333 + $0xd8] sm:$0xff]
        %v2382 = vld [vmem:[%s333 + $0xe0] sm:$0xff]
        %v2383 = vld [vmem:[%s333 + $0xe8] sm:$0xff]
        %v2384 = vld [vmem:[%s333 + $0xf0] sm:$0xff]
        %v2385 = vld [vmem:[%s333 + $0xf8] sm:$0xff]
        %v2418 = vunpack.c.l.b16 %v2354
        %v2419 = vunpack.c.h.b16 %v2354
        %v2420 = vunpack.c.l.b16 %v2355
        %v2421 = vunpack.c.h.b16 %v2355
        %v2422 = vunpack.c.l.b16 %v2356
        %v2423 = vunpack.c.h.b16 %v2356
        %v2424 = vunpack.c.l.b16 %v2357
        %v2425 = vunpack.c.h.b16 %v2357
        %v2426 = vunpack.c.l.b16 %v2358
        %v2427 = vunpack.c.h.b16 %v2358
        %v2428 = vunpack.c.l.b16 %v2359
        %v2429 = vunpack.c.h.b16 %v2359
        %v2430 = vunpack.c.l.b16 %v2360
        %v2431 = vunpack.c.h.b16 %v2360
        %v2432 = vunpack.c.l.b16 %v2361
        %v2433 = vunpack.c.h.b16 %v2361
        %v2434 = vunpack.c.l.b16 %v2362
        %v2435 = vunpack.c.h.b16 %v2362
        %v2436 = vunpack.c.l.b16 %v2363
        %v2437 = vunpack.c.h.b16 %v2363
        %v2438 = vunpack.c.l.b16 %v2364
        %v2439 = vunpack.c.h.b16 %v2364
        %v2440 = vunpack.c.l.b16 %v2365
        %v2441 = vunpack.c.h.b16 %v2365
        %v2442 = vunpack.c.l.b16 %v2366
        %v2443 = vunpack.c.h.b16 %v2366
        %v2444 = vunpack.c.l.b16 %v2367
        %v2445 = vunpack.c.h.b16 %v2367
        %v2446 = vunpack.c.l.b16 %v2368
        %v2447 = vunpack.c.h.b16 %v2368
        %v2448 = vunpack.c.l.b16 %v2369
        %v2449 = vunpack.c.h.b16 %v2369
        %v2450 = vunpack.c.l.b16 %v2370
        %v2451 = vunpack.c.h.b16 %v2370
        %v2452 = vunpack.c.l.b16 %v2371
        %v2453 = vunpack.c.h.b16 %v2371
        %v2454 = vunpack.c.l.b16 %v2372
        %v2455 = vunpack.c.h.b16 %v2372
        %v2456 = vunpack.c.l.b16 %v2373
        %v2457 = vunpack.c.h.b16 %v2373
        %v2458 = vunpack.c.l.b16 %v2374
        %v2459 = vunpack.c.h.b16 %v2374
        %v2460 = vunpack.c.l.b16 %v2375
        %v2461 = vunpack.c.h.b16 %v2375
        %v2462 = vunpack.c.l.b16 %v2376
        %v2463 = vunpack.c.h.b16 %v2376
        %v2464 = vunpack.c.l.b16 %v2377
        %v2465 = vunpack.c.h.b16 %v2377
        %v2466 = vunpack.c.l.b16 %v2378
        %v2467 = vunpack.c.h.b16 %v2378
        %v2468 = vunpack.c.l.b16 %v2379
        %v2469 = vunpack.c.h.b16 %v2379
        %v2470 = vunpack.c.l.b16 %v2380
        %v2471 = vunpack.c.h.b16 %v2380
        %v2472 = vunpack.c.l.b16 %v2381
        %v2473 = vunpack.c.h.b16 %v2381
        %v2474 = vunpack.c.l.b16 %v2382
        %v2475 = vunpack.c.h.b16 %v2382
        %v2476 = vunpack.c.l.b16 %v2383
        %v2477 = vunpack.c.h.b16 %v2383
        %v2478 = vunpack.c.l.b16 %v2384
        %v2479 = vunpack.c.h.b16 %v2384
        %v2480 = vunpack.c.l.b16 %v2385
        %v2481 = vunpack.c.h.b16 %v2385
        %v2482 = vpack.c.b16 %v2420, %v2418
        %v2483 = vpack.c.b16 %v2421, %v2419
        %v2484 = vpack.c.b16 %v2424, %v2422
        %v2485 = vpack.c.b16 %v2425, %v2423
        %v2486 = vpack.c.b16 %v2428, %v2426
        %v2487 = vpack.c.b16 %v2429, %v2427
        %v2488 = vpack.c.b16 %v2432, %v2430
        %v2489 = vpack.c.b16 %v2433, %v2431
        %v2490 = vpack.c.b16 %v2436, %v2434
        %v2491 = vpack.c.b16 %v2437, %v2435
        %v2492 = vpack.c.b16 %v2440, %v2438
        %v2493 = vpack.c.b16 %v2441, %v2439
        %v2494 = vpack.c.b16 %v2444, %v2442
        %v2495 = vpack.c.b16 %v2445, %v2443
        %v2496 = vpack.c.b16 %v2448, %v2446
        %v2497 = vpack.c.b16 %v2449, %v2447
        %v2498 = vpack.c.b16 %v2452, %v2450
        %v2499 = vpack.c.b16 %v2453, %v2451
        %v2500 = vpack.c.b16 %v2456, %v2454
        %v2501 = vpack.c.b16 %v2457, %v2455
        %v2502 = vpack.c.b16 %v2460, %v2458
        %v2503 = vpack.c.b16 %v2461, %v2459
        %v2504 = vpack.c.b16 %v2464, %v2462
        %v2505 = vpack.c.b16 %v2465, %v2463
        %v2506 = vpack.c.b16 %v2468, %v2466
        %v2507 = vpack.c.b16 %v2469, %v2467
        %v2508 = vpack.c.b16 %v2472, %v2470
        %v2509 = vpack.c.b16 %v2473, %v2471
        %v2510 = vpack.c.b16 %v2476, %v2474
        %v2511 = vpack.c.b16 %v2477, %v2475
        %v2512 = vpack.c.b16 %v2480, %v2478
        %v2513 = vpack.c.b16 %v2481, %v2479
        %2546 = vmatprep.subr.bf16.mxu0 %v2497
        %2547 = vmatpush1.bf16.msra.mxu0 %v2496
        %2548 = vmatprep.subr.bf16.mxu0 %v2495
        %2549 = vmatpush1.bf16.msra.mxu0 %v2494
        %2550 = vmatprep.subr.bf16.mxu0 %v2493
        %2551 = vmatpush1.bf16.msra.mxu0 %v2492
        %2552 = vmatprep.subr.bf16.mxu0 %v2491
        %2553 = vmatpush1.bf16.msra.mxu0 %v2490
        %2554 = vmatprep.subr.bf16.mxu0 %v2489
        %2555 = vmatpush1.bf16.msra.mxu0 %v2488
        %2556 = vmatprep.subr.bf16.mxu0 %v2487
        %2557 = vmatpush1.bf16.msra.mxu0 %v2486
        %2558 = vmatprep.subr.bf16.mxu0 %v2485
        %2559 = vmatpush1.bf16.msra.mxu0 %v2484
        %2560 = vmatprep.subr.bf16.mxu0 %v2483
        %2561 = vmatpush1.bf16.msra.mxu0 %v2482
        %2562 = vmatprep.subr.bf16.mxu0 %v2513
        %2563 = vmatpush2.bf16.msra.mxu0 %v2512
        %2564 = vmatprep.subr.bf16.mxu0 %v2511
        %2565 = vmatpush2.bf16.msra.mxu0 %v2510
        %2566 = vmatprep.subr.bf16.mxu0 %v2509
        %2567 = vmatpush2.bf16.msra.mxu0 %v2508
        %2568 = vmatprep.subr.bf16.mxu0 %v2507
        %2569 = vmatpush2.bf16.msra.mxu0 %v2506
        %2570 = vmatprep.subr.bf16.mxu0 %v2505
        %2571 = vmatpush2.bf16.msra.mxu0 %v2504
        %2572 = vmatprep.subr.bf16.mxu0 %v2503
        %2573 = vmatpush2.bf16.msra.mxu0 %v2502
        %2574 = vmatprep.subr.bf16.mxu0 %v2501
        %2575 = vmatpush2.bf16.msra.mxu0 %v2500
        %2576 = vmatprep.subr.bf16.mxu0 %v2499
        %2577 = vmatpush2.bf16.msra.mxu0 %v2498
        %2578 = vmatprep.mubr.bf16.mxu0 %v2353
        %2579 = vmatmul.mubr.bf16.gmra.mxu0 %v2352
        %v2580 = vpop.f32.mrf.mxu0
        %v2581 = vadd.f32 0.0, %v2580
        %v2582 = vpop.f32.mrf.mxu0
        %v2583 = vadd.f32 0.0, %v2582
        %v2584 = vpop.f32.mrf.mxu0
        %v2585 = vpop.f32.mrf.mxu0
        %2586 = vdwg.mxu0
        %v2587 = vadd.f32 %v2350, %v2581
        %v2588 = vadd.f32 %v2351, %v2583
        %2589 = vst [vmem:[#allocation2] sm:$0xff] %v2587
        %2590 = vst [vmem:[#allocation2 + $0x8] sm:$0xff] %v2588
        %p2591 = scmp.eq.s32.totalorder %s31, 1
        // Predicated region
        $region65: #{tpu_custom_call.1} parent=39 // pred_check
          %p2592 = pneg %p2591
        $region66: #{tpu_custom_call.1} parent=39 // pred_check_branch
          %2594 = sbr.rel (%p2592) target = $region68
        $region67: #{tpu_custom_call.1} parent=39 // pred_region
          %v2595 = vld [vmem:[#allocation2] sm:$0xff]
          %v2596 = vld [vmem:[#allocation2 + $0x8] sm:$0xff]
          %2597 = vst [vmem:[%s373] sm:$0xff] %v2595
          %2598 = vst [vmem:[%s373 + $0x8] sm:$0xff] %v2596
        $region68: #{tpu_custom_call.1} parent=39 // pred_fallthru
          _
        %s2599 = sand.u32 %s178, 1
        %s2600 = scalar_lea.sflag [#allocation5], %s2599
        %s2601 = sand.u32 %s178, 1
        %s2602 = smul.addr %s2601, 16
        %s2603 = scalar_lea.vmem [#allocation12], %s2602
        // Predicated region
        $region69: #{tpu_custom_call.1} parent=39 // pred_check
          %p2604 = pneg %p188
        $region70: #{tpu_custom_call.1} parent=39 // pred_check_branch
          %2606 = sbr.rel (%p2604) target = $region72
        $region71: #{tpu_custom_call.1} parent=39 // pred_region
          %s2608 = ssub.s32 256, 256
          %2609 = vsyncadd %s2600, %s2608
          %s2610 = smul.addr %s30, 2
          %s2611 = smul.addr %s2610, 128
          %s2612 = scalar_lea.hbm %s5, %s2611
          %s2614 = sshll.u32 %s2603, 4
          %s2615 = int_to_ptr.vmem [resolvable:$true] %s2614
          %2617 = dma.vmem_to_hbm [thread:$0]  %s2615, 256, %s2612, %s2600
        $region72: #{tpu_custom_call.1} parent=39 // pred_fallthru
          _
      $region40: #{tpu_custom_call.1} parent=5 // pred_fallthru
        _
      %p2618 = scmp.le.s32.totalorder 2, %s21
      // Predicated region
      $region73: #{tpu_custom_call.1} parent=5 // pred_check
        %p2619 = pneg %p2618
      $region74: #{tpu_custom_call.1} parent=5 // pred_check_branch
        %2621 = sbr.rel (%p2619) target = $region76
      $region75: #{tpu_custom_call.1} parent=5 // pred_region
        %s2622 = ssub.s32 %s21, 2
        // Predicated region
        $region77: #{tpu_custom_call.1} parent=75 // pred_check
          %p2623 = pneg %p194
        $region78: #{tpu_custom_call.1} parent=75 // pred_check_branch
          %2625 = sbr.rel (%p2623) target = $region80
        $region79: #{tpu_custom_call.1} parent=75 // pred_region
          %s2626 = sand.u32 %s179, 1
          %s2627 = scalar_lea.sflag [#allocation5], %s2626
          %s2628 = sand.u32 %s179, 1
          %s2629 = smul.addr %s2628, 16
          %s2630 = scalar_lea.vmem [#allocation12], %s2629
          %2631 = dma.done %s2627, 256
        $region80: #{tpu_custom_call.1} parent=75 // pred_fallthru
          _
      $region76: #{tpu_custom_call.1} parent=5 // pred_fallthru
        _
    $region6: #{tpu_custom_call.1} parent=1 // loop_footer
      %s25 = sadd.s32 1, %s21
    $region7: #{tpu_custom_call.1} parent=1 // loop_footer_branch
      %20 = sbr.rel target = $region3
    $region8: #{tpu_custom_call.1} parent=1 // loop_exit
      _
    %2632 = vsyncpa [#allocation4], 1
    %s2633 = scalar_lea.sflag [#allocation4], 1
    %2634 = vsyncpa %s2633, 1
    %2635 = vsyncpa [#allocation7], 1
    %s2636 = scalar_lea.sflag [#allocation7], 1
    %2637 = vsyncpa %s2636, 1
    %2638 = vsyncpa [#allocation10], 1
    %s2639 = scalar_lea.sflag [#allocation10], 1
    %2640 = vsyncpa %s2639, 1
    %2641 = vsyncpa [#allocation5], 1
    %s2642 = scalar_lea.sflag [#allocation5], 1
    %2643 = vsyncpa %s2642, 1

</llo_original>
